<compile_context>
chip_gen: v5e
topology: v5e:2x2
jax: 0.10.0
libtpu: 0.0.40
codegen_flags: <defaults>
</compile_context>

<pallas_src>
import math
import jax
import jax.numpy as jnp
from jax.experimental import pallas as pl
from jax.experimental.pallas import tpu as pltpu

# ---- small config consistent with GRU4Rec args ----
B = 2                  # batch size
K = 3                  # negative_sampling_ratio  -> 1 + K candidates
C = 1 + K
L = 8                  # user_log_length
W = 4                  # num_words_abstract
IDS_LEN = 3 * W        # ids | token_type_ids | attention_mask
E = 32                 # word_embedding_dim
H = E // 4             # GRU hidden size
VOCAB = 50
VOCAB_PAD = 128        # lane-dense one-hot axis
BP = 8                 # batch rows padded to one sublane tile
GP = 128               # per-gate lane padding (each GRU gate in its own vreg block)
ROWS = L * BP + B * BP # 64 clicked-log rows (time-major) + 16 candidate rows


def _full(shape):
    """BlockSpec covering the whole array for a grid=(1,) call."""
    nd = len(shape)
    return pl.BlockSpec(shape, lambda *_, _nd=nd: (0,) * _nd)


def _sigmoid(x):
    # explicit form (exp + div) to stay on well-supported Mosaic ops
    return 1.0 / (1.0 + jnp.exp(-x))


# ---------------- fused kernel: one-hot encode -> GRU -> dense -> score -> CE loss ------


def gru4rec_kernel(ids_ref, emb_ref, wi_ref, wh_ref, wd_ref, bd_ref, gt_ref, tgt_ref,
                   score_ref, loss_ref, xproj_ref):
    # ids_ref: (ROWS, W) int32   emb_ref: (VOCAB_PAD, E)
    # wi_ref: (E, 3*GP)  wh_ref: (GP, 3*GP)  wd_ref: (GP, E)  bd_ref: (1, E)
    # gt_ref: (BP, 1) int32 (= seq_len-1, -1 on padded rows)   tgt_ref: (B, 1) int32
    # score_ref: (B, C)  loss_ref: (1, 1)   xproj_ref scratch: (L*BP, 3*GP)
    inv_w = 1.0 / W

    # 1) ALL text encodings (clicked log, time-major batch-padded; then candidates) in one
    #    MXU matmul: scaled one-hot bag-of-words (ROWS, VOCAB_PAD) @ emb (VOCAB_PAD, E).
    vocab_iota = jax.lax.broadcasted_iota(jnp.int32, (ROWS, VOCAB_PAD), 1)
    bag = jnp.zeros((ROWS, VOCAB_PAD), jnp.float32)
    for w in range(W):                                           # W=4 vectorized compares
        tok_w = ids_ref[:, w:w + 1]                              # (ROWS, 1) int32
        bag = bag + jnp.where(vocab_iota == tok_w, inv_w, 0.0)
    enc = jnp.dot(bag, emb_ref[...], preferred_element_type=jnp.float32)   # (ROWS, E)

    # 2) GRU user encoder (bias-free, PyTorch gate order r|z|n).
    #    Input projection hoisted out of the recurrence; gates padded to 128-lane blocks
    #    so every slice on the serial chain is a vreg-boundary slice.
    xproj_ref[...] = jnp.dot(enc[0:L * BP, :], wi_ref[...],
                             preferred_element_type=jnp.float32)           # (L*BP, 3*GP)
    wh = wh_ref[...]                                                        # (GP, 3*GP)
    gt = gt_ref[...]                                                        # (BP, 1)

    h = jnp.zeros((BP, GP), jnp.float32)    # hidden state lives in lanes [0:H); rest stays 0
    g = jnp.zeros((BP, GP), jnp.float32)    # gathered hidden state (at t == seq_len - 1)
    for t in range(L):                                          # static unrolled recurrence
        xp = xproj_ref[t * BP:(t + 1) * BP, :]                  # aligned (8, 3*GP) tile
        hp = jnp.dot(h, wh, preferred_element_type=jnp.float32) # only serial matmul per step
        r = _sigmoid(xp[:, 0:GP] + hp[:, 0:GP])
        z = _sigmoid(xp[:, GP:2 * GP] + hp[:, GP:2 * GP])
        n = jnp.tanh(xp[:, 2 * GP:3 * GP] + r * hp[:, 2 * GP:3 * GP])
        h = (1.0 - z) * n + z * h                               # PyTorch GRU update
        # gather_indexes (if a mask row were all zeros, gt = -1 and g stays 0;
        # torch.gather would error on that degenerate case)
        g = jnp.where(gt == t, h, g)

    # dense(hidden_size -> embedding_size) at the gathered position
    user = jnp.dot(g, wd_ref[...], preferred_element_type=jnp.float32) + bd_ref[...]  # (BP, E)

    # 3) candidate scores (torch.bmm equivalent via dot_general on E) + CrossEntropyLoss.
    total = jnp.zeros((1, 1), jnp.float32)
    for b in range(B):
        cand_b = enc[L * BP + b * BP: L * BP + (b + 1) * BP, :]             # (BP, E) aligned
        s_b = jax.lax.dot_general(user[b:b + 1, :], cand_b,
                                  (((1,), (1,)), ((), ())),
                                  preferred_element_type=jnp.float32)       # (1, BP)
        s_b = s_b[:, 0:C]                                                   # (1, C)
        score_ref[b:b + 1, :] = s_b
        m = jnp.max(s_b, axis=-1, keepdims=True)
        lse = m + jnp.log(jnp.sum(jnp.exp(s_b - m), axis=-1, keepdims=True))
        onehot = jax.lax.broadcasted_iota(jnp.int32, (1, C), 1) == tgt_ref[b:b + 1, :]
        tgt_logit = jnp.sum(jnp.where(onehot, s_b, 0.0), axis=-1, keepdims=True)
        total = total + (lse - tgt_logit)
    loss_ref[...] = total * (1.0 / B)


# ---------------- forward (thin host-side glue, jitted) ----------------


def _gru4rec_forward(packed, input_ids, log_ids, log_mask, targets):
    # NewsEncoder narrows to the 'abstract' attribute; TextEncoder splits ids/type/attmask.
    # TODO(synk): `bert_model` is an external injected dependency with no in-repo definition;
    # hidden_states[-1] is replaced by a deterministic token-embedding lookup stand-in
    # (token_type / attention_mask unused by the stand-in).
    log_tok = log_ids[:, :, :W].astype(jnp.int32)                 # (B, L, W)
    cand_tok = input_ids[:, :, :W].astype(jnp.int32)              # (B, C, W)

    # clicked-log ids time-major with batch padded to 8 rows / step; candidates padded to 8
    log_tm = jnp.transpose(log_tok, (1, 0, 2))                    # (L, B, W)
    log_tm = jnp.pad(log_tm, ((0, 0), (0, BP - B), (0, 0))).reshape(L * BP, W)
    cand_p = jnp.pad(cand_tok, ((0, 0), (0, BP - C), (0, 0))).reshape(B * BP, W)
    ids_all = jnp.concatenate([log_tm, cand_p], axis=0)           # (ROWS, W) int32

    # item_seq_len = sum(log_mask, -1); gather index = item_seq_len - 1  (host precompute)
    gt = (jnp.sum(log_mask, axis=-1).astype(jnp.int32) - 1).reshape(B, 1)
    gt_pad = jnp.concatenate([gt, jnp.full((BP - B, 1), -1, jnp.int32)], axis=0)   # (BP, 1)
    tgt = targets.reshape(B, 1).astype(jnp.int32)

    args = (ids_all, packed['emb'], packed['wi'], packed['wh'],
            packed['wd'], packed['bd'], gt_pad, tgt)

    score, loss = pl.pallas_call(
        gru4rec_kernel,
        out_shape=(jax.ShapeDtypeStruct((B, C), jnp.float32),
                   jax.ShapeDtypeStruct((1, 1), jnp.float32)),
        grid_spec=pltpu.PrefetchScalarGridSpec(
            num_scalar_prefetch=0,
            grid=(1,),
            in_specs=[_full(a.shape) for a in args],
            out_specs=(_full((B, C)), _full((1, 1))),
            scratch_shapes=[pltpu.VMEM((L * BP, 3 * GP), jnp.float32)]),   # hoisted x-proj
        compiler_params=pltpu.CompilerParams(dimension_semantics=("arbitrary",)),
    )(*args)
    # emb_dropout: identity (eval / deterministic forward)
    return loss[0, 0], score


gru4rec_forward = jax.jit(_gru4rec_forward)


# ---------------- pure-JAX reference (for correctness check) ----------------


def ref_forward(params, input_ids, log_ids, log_mask, targets):
    def enc(ids_flat):
        return jnp.mean(params['emb'][ids_flat[:, :W]], axis=1)
    news_vec = enc(input_ids.reshape(-1, IDS_LEN)).reshape(B, C, E)
    log_vec = enc(log_ids.reshape(-1, IDS_LEN)).reshape(B, L, E)
    seq_len = jnp.sum(log_mask, axis=-1).astype(jnp.int32)
    h = jnp.zeros((B, H), jnp.float32)
    outs = []
    for t in range(L):
        x_t = log_vec[:, t, :]
        r = jax.nn.sigmoid(x_t @ params['wir'] + h @ params['whr'])
        z = jax.nn.sigmoid(x_t @ params['wiz'] + h @ params['whz'])
        n = jnp.tanh(x_t @ params['win'] + r * (h @ params['whn']))
        h = (1.0 - z) * n + z * h
        outs.append(h)
    outs = jnp.stack(outs, axis=1)                                  # (B, L, H)
    dense_out = outs @ params['wd'] + params['bd']                  # (B, L, E)
    user_vec = dense_out[jnp.arange(B), seq_len - 1]                # gather_indexes
    score = jnp.einsum('bce,be->bc', news_vec, user_vec)
    logz = jax.nn.logsumexp(score, axis=-1)
    loss = jnp.mean(logz - score[jnp.arange(B), targets])
    return loss, score


# ---------------- parameters (PyTorch-style init) & kernel-side packing ----------------


def xavier_uniform(key, shape):
    fan_out, fan_in = shape
    a = math.sqrt(6.0 / (fan_in + fan_out))
    return jax.random.uniform(key, shape, jnp.float32, -a, a)


def make_params(key):
    ks = jax.random.split(key, 8)
    emb = jax.random.normal(ks[0], (VOCAB, E), jnp.float32) * 0.02
    W_ih = xavier_uniform(ks[1], (3 * H, E))     # [W_ir; W_iz; W_in]
    W_hh = xavier_uniform(ks[2], (3 * H, H))     # [W_hr; W_hz; W_hn]
    Wd = xavier_uniform(ks[3], (E, H))           # nn.Linear(H, E).weight
    bd = jax.random.uniform(ks[4], (E,), jnp.float32,
                            -1.0 / math.sqrt(H), 1.0 / math.sqrt(H))
    return {
        'emb': emb,
        'wir': W_ih[0:H].T, 'wiz': W_ih[H:2 * H].T, 'win': W_ih[2 * H:3 * H].T,
        'whr': W_hh[0:H].T, 'whz': W_hh[H:2 * H].T, 'whn': W_hh[2 * H:3 * H].T,
        'wd': Wd.T, 'bd': bd.reshape(1, E),
    }


def pack_params(params):
    """One-time packing: padded embedding table + gate-padded GRU/dense weights."""
    emb = jnp.zeros((VOCAB_PAD, E), jnp.float32).at[:VOCAB].set(params['emb'])
    wi = jnp.zeros((E, 3 * GP), jnp.float32)
    wi = (wi.at[:, 0:H].set(params['wir'])
            .at[:, GP:GP + H].set(params['wiz'])
            .at[:, 2 * GP:2 * GP + H].set(params['win']))
    wh = jnp.zeros((GP, 3 * GP), jnp.float32)
    wh = (wh.at[0:H, 0:H].set(params['whr'])
            .at[0:H, GP:GP + H].set(params['whz'])
            .at[0:H, 2 * GP:2 * GP + H].set(params['whn']))
    wd = jnp.zeros((GP, E), jnp.float32).at[0:H, :].set(params['wd'])
    return {'emb': emb, 'wi': wi, 'wh': wh, 'wd': wd, 'bd': params['bd']}


if __name__ == "__main__":
    key = jax.random.PRNGKey(0)
    kp, k1, k2 = jax.random.split(key, 3)
    params = make_params(kp)
    packed = pack_params(params)

    input_ids = jax.random.randint(k1, (B, C, IDS_LEN), 0, VOCAB, jnp.int32)
    log_ids = jax.random.randint(k2, (B, L, IDS_LEN), 0, VOCAB, jnp.int32)
    log_mask = jnp.array([[1, 1, 1, 1, 1, 1, 1, 1],
                          [1, 1, 1, 1, 1, 0, 0, 0]], jnp.float32)
    targets = jnp.array([0, 2], jnp.int32)

    loss, score = gru4rec_forward(packed, input_ids, log_ids, log_mask, targets)
    jax.block_until_ready((loss, score))

    rloss, rscore = ref_forward(params, input_ids, log_ids, log_mask, targets)
    assert score.shape == (B, C) and loss.shape == ()
    assert jnp.allclose(score, rscore, atol=1e-3, rtol=1e-3)
    assert jnp.allclose(loss, rloss, atol=1e-3, rtol=1e-3)

    print("KERNEL_OK")
</pallas_src>

<mosaic_0001>
module attributes {stable_mosaic.version = 11 : i64} {
  func.func @gru4rec_kernel(%arg0: i32, %arg1: memref<80x4xi32, #tpu.memory_space<vmem>>, %arg2: memref<128x32xf32, #tpu.memory_space<vmem>>, %arg3: memref<32x384xf32, #tpu.memory_space<vmem>>, %arg4: memref<128x384xf32, #tpu.memory_space<vmem>>, %arg5: memref<128x32xf32, #tpu.memory_space<vmem>>, %arg6: memref<1x32xf32, #tpu.memory_space<vmem>>, %arg7: memref<8x1xi32, #tpu.memory_space<vmem>>, %arg8: memref<2x1xi32, #tpu.memory_space<vmem>>, %arg9: memref<2x4xf32, #tpu.memory_space<vmem>>, %arg10: memref<1x1xf32, #tpu.memory_space<vmem>>, %arg11: memref<64x384xf32, #tpu.memory_space<vmem>>) attributes {dimension_semantics = [#tpu.dimension_semantics<arbitrary>], iteration_bounds = array<i64: 1>, scalar_prefetch = 0 : i64, scratch_operands = 1 : i64, tpu.core_type = #tpu.core_type<tc>, window_params = [{pipeline_mode = #tpu.pipeline_mode<synchronous>, transform_indices = @transform_0, window_bounds = array<i64: 80, 4>}, {pipeline_mode = #tpu.pipeline_mode<synchronous>, transform_indices = @transform_1, window_bounds = array<i64: 128, 32>}, {pipeline_mode = #tpu.pipeline_mode<synchronous>, transform_indices = @transform_2, window_bounds = array<i64: 32, 384>}, {pipeline_mode = #tpu.pipeline_mode<synchronous>, transform_indices = @transform_3, window_bounds = array<i64: 128, 384>}, {pipeline_mode = #tpu.pipeline_mode<synchronous>, transform_indices = @transform_4, window_bounds = array<i64: 128, 32>}, {pipeline_mode = #tpu.pipeline_mode<synchronous>, transform_indices = @transform_5, window_bounds = array<i64: 1, 32>}, {pipeline_mode = #tpu.pipeline_mode<synchronous>, transform_indices = @transform_6, window_bounds = array<i64: 8, 1>}, {pipeline_mode = #tpu.pipeline_mode<synchronous>, transform_indices = @transform_7, window_bounds = array<i64: 2, 1>}, {pipeline_mode = #tpu.pipeline_mode<synchronous>, transform_indices = @transform_8, window_bounds = array<i64: 2, 4>}, {pipeline_mode = #tpu.pipeline_mode<synchronous>, transform_indices = @transform_9, window_bounds = array<i64: 1, 1>}]} {
    %0 = tpu.iota {dimensions = array<i32: 1>} : vector<80x128xi32>
    %cst = arith.constant 0.000000e+00 : f32
    %1 = vector.broadcast %cst : f32 to vector<80x128xf32>
    %c0 = arith.constant 0 : index
    %c0_0 = arith.constant 0 : index
    %2 = vector.load %arg1[%c0, %c0_0] : memref<80x4xi32, #tpu.memory_space<vmem>>, vector<80x1xi32>
    %3 = vector.broadcast %2 : vector<80x1xi32> to vector<80x128xi32>
    %4 = arith.cmpi eq, %0, %3 : vector<80x128xi32>
    %cst_1 = arith.constant 2.500000e-01 : f32
    %cst_2 = arith.constant 0.000000e+00 : f32
    %5 = vector.broadcast %cst_1 : f32 to vector<80x128xf32>
    %6 = vector.broadcast %cst_2 : f32 to vector<80x128xf32>
    %7 = arith.select %4, %5, %6 : vector<80x128xi1>, vector<80x128xf32>
    %8 = arith.addf %1, %7 : vector<80x128xf32>
    %c0_3 = arith.constant 0 : index
    %c1 = arith.constant 1 : index
    %9 = vector.load %arg1[%c0_3, %c1] : memref<80x4xi32, #tpu.memory_space<vmem>>, vector<80x1xi32>
    %10 = vector.broadcast %9 : vector<80x1xi32> to vector<80x128xi32>
    %11 = arith.cmpi eq, %0, %10 : vector<80x128xi32>
    %cst_4 = arith.constant 2.500000e-01 : f32
    %cst_5 = arith.constant 0.000000e+00 : f32
    %12 = vector.broadcast %cst_4 : f32 to vector<80x128xf32>
    %13 = vector.broadcast %cst_5 : f32 to vector<80x128xf32>
    %14 = arith.select %11, %12, %13 : vector<80x128xi1>, vector<80x128xf32>
    %15 = arith.addf %8, %14 : vector<80x128xf32>
    %c0_6 = arith.constant 0 : index
    %c2 = arith.constant 2 : index
    %16 = vector.load %arg1[%c0_6, %c2] : memref<80x4xi32, #tpu.memory_space<vmem>>, vector<80x1xi32>
    %17 = vector.broadcast %16 : vector<80x1xi32> to vector<80x128xi32>
    %18 = arith.cmpi eq, %0, %17 : vector<80x128xi32>
    %cst_7 = arith.constant 2.500000e-01 : f32
    %cst_8 = arith.constant 0.000000e+00 : f32
    %19 = vector.broadcast %cst_7 : f32 to vector<80x128xf32>
    %20 = vector.broadcast %cst_8 : f32 to vector<80x128xf32>
    %21 = arith.select %18, %19, %20 : vector<80x128xi1>, vector<80x128xf32>
    %22 = arith.addf %15, %21 : vector<80x128xf32>
    %c0_9 = arith.constant 0 : index
    %c3 = arith.constant 3 : index
    %23 = vector.load %arg1[%c0_9, %c3] : memref<80x4xi32, #tpu.memory_space<vmem>>, vector<80x1xi32>
    %24 = vector.broadcast %23 : vector<80x1xi32> to vector<80x128xi32>
    %25 = arith.cmpi eq, %0, %24 : vector<80x128xi32>
    %cst_10 = arith.constant 2.500000e-01 : f32
    %cst_11 = arith.constant 0.000000e+00 : f32
    %26 = vector.broadcast %cst_10 : f32 to vector<80x128xf32>
    %27 = vector.broadcast %cst_11 : f32 to vector<80x128xf32>
    %28 = arith.select %25, %26, %27 : vector<80x128xi1>, vector<80x128xf32>
    %29 = arith.addf %22, %28 : vector<80x128xf32>
    %c0_12 = arith.constant 0 : index
    %c0_13 = arith.constant 0 : index
    %30 = vector.load %arg2[%c0_12, %c0_13] : memref<128x32xf32, #tpu.memory_space<vmem>>, vector<128x32xf32>
    %cst_14 = arith.constant dense<0.000000e+00> : vector<80x32xf32>
    %31 = tpu.matmul %29, %30, %cst_14 {dimension_numbers = #tpu.dot_dimension_numbers<[1], [0], [0], [1], [0, 0, 1, 1], [], []>} : vector<80x128xf32>, vector<128x32xf32>, vector<80x32xf32> -> vector<80x32xf32>
    %32 = vector.extract_strided_slice %31 {offsets = [0, 0], sizes = [64, 32], strides = [1, 1]} : vector<80x32xf32> to vector<64x32xf32>
    %c0_15 = arith.constant 0 : index
    %c0_16 = arith.constant 0 : index
    %33 = vector.load %arg3[%c0_15, %c0_16] : memref<32x384xf32, #tpu.memory_space<vmem>>, vector<32x384xf32>
    %cst_17 = arith.constant dense<0.000000e+00> : vector<64x384xf32>
    %34 = tpu.matmul %32, %33, %cst_17 {dimension_numbers = #tpu.dot_dimension_numbers<[1], [0], [0], [1], [0, 0, 1, 1], [], []>} : vector<64x32xf32>, vector<32x384xf32>, vector<64x384xf32> -> vector<64x384xf32>
    %c0_18 = arith.constant 0 : index
    %c0_19 = arith.constant 0 : index
    %35 = vector.load %arg11[%c0_18, %c0_19] : memref<64x384xf32, #tpu.memory_space<vmem>>, vector<64x384xf32>
    tpu.vector_store %arg11[%c0_18, %c0_19], %34 {strides = array<i32>} : memref<64x384xf32, #tpu.memory_space<vmem>>, vector<64x384xf32>,
    %c0_20 = arith.constant 0 : index
    %c0_21 = arith.constant 0 : index
    %36 = vector.load %arg4[%c0_20, %c0_21] : memref<128x384xf32, #tpu.memory_space<vmem>>, vector<128x384xf32>
    %c0_22 = arith.constant 0 : index
    %c0_23 = arith.constant 0 : index
    %37 = vector.load %arg7[%c0_22, %c0_23] : memref<8x1xi32, #tpu.memory_space<vmem>>, vector<8x1xi32>
    %cst_24 = arith.constant 0.000000e+00 : f32
    %38 = vector.broadcast %cst_24 : f32 to vector<8x128xf32>
    %cst_25 = arith.constant 0.000000e+00 : f32
    %39 = vector.broadcast %cst_25 : f32 to vector<8x128xf32>
    %c0_26 = arith.constant 0 : index
    %c0_27 = arith.constant 0 : index
    %40 = vector.load %arg11[%c0_26, %c0_27] : memref<64x384xf32, #tpu.memory_space<vmem>>, vector<8x384xf32>
    %cst_28 = arith.constant dense<0.000000e+00> : vector<8x384xf32>
    %41 = tpu.matmul %38, %36, %cst_28 {dimension_numbers = #tpu.dot_dimension_numbers<[1], [0], [0], [1], [0, 0, 1, 1], [], []>} : vector<8x128xf32>, vector<128x384xf32>, vector<8x384xf32> -> vector<8x384xf32>
    %42 = vector.extract_strided_slice %40 {offsets = [0, 0], sizes = [8, 128], strides = [1, 1]} : vector<8x384xf32> to vector<8x128xf32>
    %43 = vector.extract_strided_slice %41 {offsets = [0, 0], sizes = [8, 128], strides = [1, 1]} : vector<8x384xf32> to vector<8x128xf32>
    %44 = arith.addf %42, %43 : vector<8x128xf32>
    %cst_29 = arith.constant 0.000000e+00 : f32
    %45 = vector.broadcast %cst_29 : f32 to vector<8x128xf32>
    %46 = arith.subf %45, %44 : vector<8x128xf32>
    %47 = math.exp %46 : vector<8x128xf32>
    %cst_30 = arith.constant 1.000000e+00 : f32
    %48 = vector.broadcast %cst_30 : f32 to vector<8x128xf32>
    %49 = arith.addf %48, %47 : vector<8x128xf32>
    %cst_31 = arith.constant 1.000000e+00 : f32
    %50 = vector.broadcast %cst_31 : f32 to vector<8x128xf32>
    %51 = arith.divf %50, %49 : vector<8x128xf32>
    %52 = vector.extract_strided_slice %40 {offsets = [0, 128], sizes = [8, 128], strides = [1, 1]} : vector<8x384xf32> to vector<8x128xf32>
    %53 = vector.extract_strided_slice %41 {offsets = [0, 128], sizes = [8, 128], strides = [1, 1]} : vector<8x384xf32> to vector<8x128xf32>
    %54 = arith.addf %52, %53 : vector<8x128xf32>
    %cst_32 = arith.constant 0.000000e+00 : f32
    %55 = vector.broadcast %cst_32 : f32 to vector<8x128xf32>
    %56 = arith.subf %55, %54 : vector<8x128xf32>
    %57 = math.exp %56 : vector<8x128xf32>
    %cst_33 = arith.constant 1.000000e+00 : f32
    %58 = vector.broadcast %cst_33 : f32 to vector<8x128xf32>
    %59 = arith.addf %58, %57 : vector<8x128xf32>
    %cst_34 = arith.constant 1.000000e+00 : f32
    %60 = vector.broadcast %cst_34 : f32 to vector<8x128xf32>
    %61 = arith.divf %60, %59 : vector<8x128xf32>
    %62 = vector.extract_strided_slice %40 {offsets = [0, 256], sizes = [8, 128], strides = [1, 1]} : vector<8x384xf32> to vector<8x128xf32>
    %63 = vector.extract_strided_slice %41 {offsets = [0, 256], sizes = [8, 128], strides = [1, 1]} : vector<8x384xf32> to vector<8x128xf32>
    %64 = arith.mulf %51, %63 : vector<8x128xf32>
    %65 = arith.addf %62, %64 : vector<8x128xf32>
    %66 = math.tanh %65 : vector<8x128xf32>
    %cst_35 = arith.constant 1.000000e+00 : f32
    %67 = vector.broadcast %cst_35 : f32 to vector<8x128xf32>
    %68 = arith.subf %67, %61 : vector<8x128xf32>
    %69 = arith.mulf %68, %66 : vector<8x128xf32>
    %70 = arith.mulf %61, %38 : vector<8x128xf32>
    %71 = arith.addf %69, %70 : vector<8x128xf32>
    %c0_i32 = arith.constant 0 : i32
    %72 = vector.broadcast %c0_i32 : i32 to vector<8x1xi32>
    %73 = arith.cmpi eq, %37, %72 : vector<8x1xi32>
    %74 = vector.shape_cast %73 : vector<8x1xi1> to vector<8x1xi1>
    %75 = vector.broadcast %74 : vector<8x1xi1> to vector<8x128xi1>
    %76 = arith.select %75, %71, %39 : vector<8x128xi1>, vector<8x128xf32>
    %c8 = arith.constant 8 : index
    %c0_36 = arith.constant 0 : index
    %77 = vector.load %arg11[%c8, %c0_36] : memref<64x384xf32, #tpu.memory_space<vmem>>, vector<8x384xf32>
    %cst_37 = arith.constant dense<0.000000e+00> : vector<8x384xf32>
    %78 = tpu.matmul %71, %36, %cst_37 {dimension_numbers = #tpu.dot_dimension_numbers<[1], [0], [0], [1], [0, 0, 1, 1], [], []>} : vector<8x128xf32>, vector<128x384xf32>, vector<8x384xf32> -> vector<8x384xf32>
    %79 = vector.extract_strided_slice %77 {offsets = [0, 0], sizes = [8, 128], strides = [1, 1]} : vector<8x384xf32> to vector<8x128xf32>
    %80 = vector.extract_strided_slice %78 {offsets = [0, 0], sizes = [8, 128], strides = [1, 1]} : vector<8x384xf32> to vector<8x128xf32>
    %81 = arith.addf %79, %80 : vector<8x128xf32>
    %cst_38 = arith.constant 0.000000e+00 : f32
    %82 = vector.broadcast %cst_38 : f32 to vector<8x128xf32>
    %83 = arith.subf %82, %81 : vector<8x128xf32>
    %84 = math.exp %83 : vector<8x128xf32>
    %cst_39 = arith.constant 1.000000e+00 : f32
    %85 = vector.broadcast %cst_39 : f32 to vector<8x128xf32>
    %86 = arith.addf %85, %84 : vector<8x128xf32>
    %cst_40 = arith.constant 1.000000e+00 : f32
    %87 = vector.broadcast %cst_40 : f32 to vector<8x128xf32>
    %88 = arith.divf %87, %86 : vector<8x128xf32>
    %89 = vector.extract_strided_slice %77 {offsets = [0, 128], sizes = [8, 128], strides = [1, 1]} : vector<8x384xf32> to vector<8x128xf32>
    %90 = vector.extract_strided_slice %78 {offsets = [0, 128], sizes = [8, 128], strides = [1, 1]} : vector<8x384xf32> to vector<8x128xf32>
    %91 = arith.addf %89, %90 : vector<8x128xf32>
    %cst_41 = arith.constant 0.000000e+00 : f32
    %92 = vector.broadcast %cst_41 : f32 to vector<8x128xf32>
    %93 = arith.subf %92, %91 : vector<8x128xf32>
    %94 = math.exp %93 : vector<8x128xf32>
    %cst_42 = arith.constant 1.000000e+00 : f32
    %95 = vector.broadcast %cst_42 : f32 to vector<8x128xf32>
    %96 = arith.addf %95, %94 : vector<8x128xf32>
    %cst_43 = arith.constant 1.000000e+00 : f32
    %97 = vector.broadcast %cst_43 : f32 to vector<8x128xf32>
    %98 = arith.divf %97, %96 : vector<8x128xf32>
    %99 = vector.extract_strided_slice %77 {offsets = [0, 256], sizes = [8, 128], strides = [1, 1]} : vector<8x384xf32> to vector<8x128xf32>
    %100 = vector.extract_strided_slice %78 {offsets = [0, 256], sizes = [8, 128], strides = [1, 1]} : vector<8x384xf32> to vector<8x128xf32>
    %101 = arith.mulf %88, %100 : vector<8x128xf32>
    %102 = arith.addf %99, %101 : vector<8x128xf32>
    %103 = math.tanh %102 : vector<8x128xf32>
    %cst_44 = arith.constant 1.000000e+00 : f32
    %104 = vector.broadcast %cst_44 : f32 to vector<8x128xf32>
    %105 = arith.subf %104, %98 : vector<8x128xf32>
    %106 = arith.mulf %105, %103 : vector<8x128xf32>
    %107 = arith.mulf %98, %71 : vector<8x128xf32>
    %108 = arith.addf %106, %107 : vector<8x128xf32>
    %c1_i32 = arith.constant 1 : i32
    %109 = vector.broadcast %c1_i32 : i32 to vector<8x1xi32>
    %110 = arith.cmpi eq, %37, %109 : vector<8x1xi32>
    %111 = vector.shape_cast %110 : vector<8x1xi1> to vector<8x1xi1>
    %112 = vector.broadcast %111 : vector<8x1xi1> to vector<8x128xi1>
    %113 = arith.select %112, %108, %76 : vector<8x128xi1>, vector<8x128xf32>
    %c16 = arith.constant 16 : index
    %c0_45 = arith.constant 0 : index
    %114 = vector.load %arg11[%c16, %c0_45] : memref<64x384xf32, #tpu.memory_space<vmem>>, vector<8x384xf32>
    %cst_46 = arith.constant dense<0.000000e+00> : vector<8x384xf32>
    %115 = tpu.matmul %108, %36, %cst_46 {dimension_numbers = #tpu.dot_dimension_numbers<[1], [0], [0], [1], [0, 0, 1, 1], [], []>} : vector<8x128xf32>, vector<128x384xf32>, vector<8x384xf32> -> vector<8x384xf32>
    %116 = vector.extract_strided_slice %114 {offsets = [0, 0], sizes = [8, 128], strides = [1, 1]} : vector<8x384xf32> to vector<8x128xf32>
    %117 = vector.extract_strided_slice %115 {offsets = [0, 0], sizes = [8, 128], strides = [1, 1]} : vector<8x384xf32> to vector<8x128xf32>
    %118 = arith.addf %116, %117 : vector<8x128xf32>
    %cst_47 = arith.constant 0.000000e+00 : f32
    %119 = vector.broadcast %cst_47 : f32 to vector<8x128xf32>
    %120 = arith.subf %119, %118 : vector<8x128xf32>
    %121 = math.exp %120 : vector<8x128xf32>
    %cst_48 = arith.constant 1.000000e+00 : f32
    %122 = vector.broadcast %cst_48 : f32 to vector<8x128xf32>
    %123 = arith.addf %122, %121 : vector<8x128xf32>
    %cst_49 = arith.constant 1.000000e+00 : f32
    %124 = vector.broadcast %cst_49 : f32 to vector<8x128xf32>
    %125 = arith.divf %124, %123 : vector<8x128xf32>
    %126 = vector.extract_strided_slice %114 {offsets = [0, 128], sizes = [8, 128], strides = [1, 1]} : vector<8x384xf32> to vector<8x128xf32>
    %127 = vector.extract_strided_slice %115 {offsets = [0, 128], sizes = [8, 128], strides = [1, 1]} : vector<8x384xf32> to vector<8x128xf32>
    %128 = arith.addf %126, %127 : vector<8x128xf32>
    %cst_50 = arith.constant 0.000000e+00 : f32
    %129 = vector.broadcast %cst_50 : f32 to vector<8x128xf32>
    %130 = arith.subf %129, %128 : vector<8x128xf32>
    %131 = math.exp %130 : vector<8x128xf32>
    %cst_51 = arith.constant 1.000000e+00 : f32
    %132 = vector.broadcast %cst_51 : f32 to vector<8x128xf32>
    %133 = arith.addf %132, %131 : vector<8x128xf32>
    %cst_52 = arith.constant 1.000000e+00 : f32
    %134 = vector.broadcast %cst_52 : f32 to vector<8x128xf32>
    %135 = arith.divf %134, %133 : vector<8x128xf32>
    %136 = vector.extract_strided_slice %114 {offsets = [0, 256], sizes = [8, 128], strides = [1, 1]} : vector<8x384xf32> to vector<8x128xf32>
    %137 = vector.extract_strided_slice %115 {offsets = [0, 256], sizes = [8, 128], strides = [1, 1]} : vector<8x384xf32> to vector<8x128xf32>
    %138 = arith.mulf %125, %137 : vector<8x128xf32>
    %139 = arith.addf %136, %138 : vector<8x128xf32>
    %140 = math.tanh %139 : vector<8x128xf32>
    %cst_53 = arith.constant 1.000000e+00 : f32
    %141 = vector.broadcast %cst_53 : f32 to vector<8x128xf32>
    %142 = arith.subf %141, %135 : vector<8x128xf32>
    %143 = arith.mulf %142, %140 : vector<8x128xf32>
    %144 = arith.mulf %135, %108 : vector<8x128xf32>
    %145 = arith.addf %143, %144 : vector<8x128xf32>
    %c2_i32 = arith.constant 2 : i32
    %146 = vector.broadcast %c2_i32 : i32 to vector<8x1xi32>
    %147 = arith.cmpi eq, %37, %146 : vector<8x1xi32>
    %148 = vector.shape_cast %147 : vector<8x1xi1> to vector<8x1xi1>
    %149 = vector.broadcast %148 : vector<8x1xi1> to vector<8x128xi1>
    %150 = arith.select %149, %145, %113 : vector<8x128xi1>, vector<8x128xf32>
    %c24 = arith.constant 24 : index
    %c0_54 = arith.constant 0 : index
    %151 = vector.load %arg11[%c24, %c0_54] : memref<64x384xf32, #tpu.memory_space<vmem>>, vector<8x384xf32>
    %cst_55 = arith.constant dense<0.000000e+00> : vector<8x384xf32>
    %152 = tpu.matmul %145, %36, %cst_55 {dimension_numbers = #tpu.dot_dimension_numbers<[1], [0], [0], [1], [0, 0, 1, 1], [], []>} : vector<8x128xf32>, vector<128x384xf32>, vector<8x384xf32> -> vector<8x384xf32>
    %153 = vector.extract_strided_slice %151 {offsets = [0, 0], sizes = [8, 128], strides = [1, 1]} : vector<8x384xf32> to vector<8x128xf32>
    %154 = vector.extract_strided_slice %152 {offsets = [0, 0], sizes = [8, 128], strides = [1, 1]} : vector<8x384xf32> to vector<8x128xf32>
    %155 = arith.addf %153, %154 : vector<8x128xf32>
    %cst_56 = arith.constant 0.000000e+00 : f32
    %156 = vector.broadcast %cst_56 : f32 to vector<8x128xf32>
    %157 = arith.subf %156, %155 : vector<8x128xf32>
    %158 = math.exp %157 : vector<8x128xf32>
    %cst_57 = arith.constant 1.000000e+00 : f32
    %159 = vector.broadcast %cst_57 : f32 to vector<8x128xf32>
    %160 = arith.addf %159, %158 : vector<8x128xf32>
    %cst_58 = arith.constant 1.000000e+00 : f32
    %161 = vector.broadcast %cst_58 : f32 to vector<8x128xf32>
    %162 = arith.divf %161, %160 : vector<8x128xf32>
    %163 = vector.extract_strided_slice %151 {offsets = [0, 128], sizes = [8, 128], strides = [1, 1]} : vector<8x384xf32> to vector<8x128xf32>
    %164 = vector.extract_strided_slice %152 {offsets = [0, 128], sizes = [8, 128], strides = [1, 1]} : vector<8x384xf32> to vector<8x128xf32>
    %165 = arith.addf %163, %164 : vector<8x128xf32>
    %cst_59 = arith.constant 0.000000e+00 : f32
    %166 = vector.broadcast %cst_59 : f32 to vector<8x128xf32>
    %167 = arith.subf %166, %165 : vector<8x128xf32>
    %168 = math.exp %167 : vector<8x128xf32>
    %cst_60 = arith.constant 1.000000e+00 : f32
    %169 = vector.broadcast %cst_60 : f32 to vector<8x128xf32>
    %170 = arith.addf %169, %168 : vector<8x128xf32>
    %cst_61 = arith.constant 1.000000e+00 : f32
    %171 = vector.broadcast %cst_61 : f32 to vector<8x128xf32>
    %172 = arith.divf %171, %170 : vector<8x128xf32>
    %173 = vector.extract_strided_slice %151 {offsets = [0, 256], sizes = [8, 128], strides = [1, 1]} : vector<8x384xf32> to vector<8x128xf32>
    %174 = vector.extract_strided_slice %152 {offsets = [0, 256], sizes = [8, 128], strides = [1, 1]} : vector<8x384xf32> to vector<8x128xf32>
    %175 = arith.mulf %162, %174 : vector<8x128xf32>
    %176 = arith.addf %173, %175 : vector<8x128xf32>
    %177 = math.tanh %176 : vector<8x128xf32>
    %cst_62 = arith.constant 1.000000e+00 : f32
    %178 = vector.broadcast %cst_62 : f32 to vector<8x128xf32>
    %179 = arith.subf %178, %172 : vector<8x128xf32>
    %180 = arith.mulf %179, %177 : vector<8x128xf32>
    %181 = arith.mulf %172, %145 : vector<8x128xf32>
    %182 = arith.addf %180, %181 : vector<8x128xf32>
    %c3_i32 = arith.constant 3 : i32
    %183 = vector.broadcast %c3_i32 : i32 to vector<8x1xi32>
    %184 = arith.cmpi eq, %37, %183 : vector<8x1xi32>
    %185 = vector.shape_cast %184 : vector<8x1xi1> to vector<8x1xi1>
    %186 = vector.broadcast %185 : vector<8x1xi1> to vector<8x128xi1>
    %187 = arith.select %186, %182, %150 : vector<8x128xi1>, vector<8x128xf32>
    %c32 = arith.constant 32 : index
    %c0_63 = arith.constant 0 : index
    %188 = vector.load %arg11[%c32, %c0_63] : memref<64x384xf32, #tpu.memory_space<vmem>>, vector<8x384xf32>
    %cst_64 = arith.constant dense<0.000000e+00> : vector<8x384xf32>
    %189 = tpu.matmul %182, %36, %cst_64 {dimension_numbers = #tpu.dot_dimension_numbers<[1], [0], [0], [1], [0, 0, 1, 1], [], []>} : vector<8x128xf32>, vector<128x384xf32>, vector<8x384xf32> -> vector<8x384xf32>
    %190 = vector.extract_strided_slice %188 {offsets = [0, 0], sizes = [8, 128], strides = [1, 1]} : vector<8x384xf32> to vector<8x128xf32>
    %191 = vector.extract_strided_slice %189 {offsets = [0, 0], sizes = [8, 128], strides = [1, 1]} : vector<8x384xf32> to vector<8x128xf32>
    %192 = arith.addf %190, %191 : vector<8x128xf32>
    %cst_65 = arith.constant 0.000000e+00 : f32
    %193 = vector.broadcast %cst_65 : f32 to vector<8x128xf32>
    %194 = arith.subf %193, %192 : vector<8x128xf32>
    %195 = math.exp %194 : vector<8x128xf32>
    %cst_66 = arith.constant 1.000000e+00 : f32
    %196 = vector.broadcast %cst_66 : f32 to vector<8x128xf32>
    %197 = arith.addf %196, %195 : vector<8x128xf32>
    %cst_67 = arith.constant 1.000000e+00 : f32
    %198 = vector.broadcast %cst_67 : f32 to vector<8x128xf32>
    %199 = arith.divf %198, %197 : vector<8x128xf32>
    %200 = vector.extract_strided_slice %188 {offsets = [0, 128], sizes = [8, 128], strides = [1, 1]} : vector<8x384xf32> to vector<8x128xf32>
    %201 = vector.extract_strided_slice %189 {offsets = [0, 128], sizes = [8, 128], strides = [1, 1]} : vector<8x384xf32> to vector<8x128xf32>
    %202 = arith.addf %200, %201 : vector<8x128xf32>
    %cst_68 = arith.constant 0.000000e+00 : f32
    %203 = vector.broadcast %cst_68 : f32 to vector<8x128xf32>
    %204 = arith.subf %203, %202 : vector<8x128xf32>
    %205 = math.exp %204 : vector<8x128xf32>
    %cst_69 = arith.constant 1.000000e+00 : f32
    %206 = vector.broadcast %cst_69 : f32 to vector<8x128xf32>
    %207 = arith.addf %206, %205 : vector<8x128xf32>
    %cst_70 = arith.constant 1.000000e+00 : f32
    %208 = vector.broadcast %cst_70 : f32 to vector<8x128xf32>
    %209 = arith.divf %208, %207 : vector<8x128xf32>
    %210 = vector.extract_strided_slice %188 {offsets = [0, 256], sizes = [8, 128], strides = [1, 1]} : vector<8x384xf32> to vector<8x128xf32>
    %211 = vector.extract_strided_slice %189 {offsets = [0, 256], sizes = [8, 128], strides = [1, 1]} : vector<8x384xf32> to vector<8x128xf32>
    %212 = arith.mulf %199, %211 : vector<8x128xf32>
    %213 = arith.addf %210, %212 : vector<8x128xf32>
    %214 = math.tanh %213 : vector<8x128xf32>
    %cst_71 = arith.constant 1.000000e+00 : f32
    %215 = vector.broadcast %cst_71 : f32 to vector<8x128xf32>
    %216 = arith.subf %215, %209 : vector<8x128xf32>
    %217 = arith.mulf %216, %214 : vector<8x128xf32>
    %218 = arith.mulf %209, %182 : vector<8x128xf32>
    %219 = arith.addf %217, %218 : vector<8x128xf32>
    %c4_i32 = arith.constant 4 : i32
    %220 = vector.broadcast %c4_i32 : i32 to vector<8x1xi32>
    %221 = arith.cmpi eq, %37, %220 : vector<8x1xi32>
    %222 = vector.shape_cast %221 : vector<8x1xi1> to vector<8x1xi1>
    %223 = vector.broadcast %222 : vector<8x1xi1> to vector<8x128xi1>
    %224 = arith.select %223, %219, %187 : vector<8x128xi1>, vector<8x128xf32>
    %c40 = arith.constant 40 : index
    %c0_72 = arith.constant 0 : index
    %225 = vector.load %arg11[%c40, %c0_72] : memref<64x384xf32, #tpu.memory_space<vmem>>, vector<8x384xf32>
    %cst_73 = arith.constant dense<0.000000e+00> : vector<8x384xf32>
    %226 = tpu.matmul %219, %36, %cst_73 {dimension_numbers = #tpu.dot_dimension_numbers<[1], [0], [0], [1], [0, 0, 1, 1], [], []>} : vector<8x128xf32>, vector<128x384xf32>, vector<8x384xf32> -> vector<8x384xf32>
    %227 = vector.extract_strided_slice %225 {offsets = [0, 0], sizes = [8, 128], strides = [1, 1]} : vector<8x384xf32> to vector<8x128xf32>
    %228 = vector.extract_strided_slice %226 {offsets = [0, 0], sizes = [8, 128], strides = [1, 1]} : vector<8x384xf32> to vector<8x128xf32>
    %229 = arith.addf %227, %228 : vector<8x128xf32>
    %cst_74 = arith.constant 0.000000e+00 : f32
    %230 = vector.broadcast %cst_74 : f32 to vector<8x128xf32>
    %231 = arith.subf %230, %229 : vector<8x128xf32>
    %232 = math.exp %231 : vector<8x128xf32>
    %cst_75 = arith.constant 1.000000e+00 : f32
    %233 = vector.broadcast %cst_75 : f32 to vector<8x128xf32>
    %234 = arith.addf %233, %232 : vector<8x128xf32>
    %cst_76 = arith.constant 1.000000e+00 : f32
    %235 = vector.broadcast %cst_76 : f32 to vector<8x128xf32>
    %236 = arith.divf %235, %234 : vector<8x128xf32>
    %237 = vector.extract_strided_slice %225 {offsets = [0, 128], sizes = [8, 128], strides = [1, 1]} : vector<8x384xf32> to vector<8x128xf32>
    %238 = vector.extract_strided_slice %226 {offsets = [0, 128], sizes = [8, 128], strides = [1, 1]} : vector<8x384xf32> to vector<8x128xf32>
    %239 = arith.addf %237, %238 : vector<8x128xf32>
    %cst_77 = arith.constant 0.000000e+00 : f32
    %240 = vector.broadcast %cst_77 : f32 to vector<8x128xf32>
    %241 = arith.subf %240, %239 : vector<8x128xf32>
    %242 = math.exp %241 : vector<8x128xf32>
    %cst_78 = arith.constant 1.000000e+00 : f32
    %243 = vector.broadcast %cst_78 : f32 to vector<8x128xf32>
    %244 = arith.addf %243, %242 : vector<8x128xf32>
    %cst_79 = arith.constant 1.000000e+00 : f32
    %245 = vector.broadcast %cst_79 : f32 to vector<8x128xf32>
    %246 = arith.divf %245, %244 : vector<8x128xf32>
    %247 = vector.extract_strided_slice %225 {offsets = [0, 256], sizes = [8, 128], strides = [1, 1]} : vector<8x384xf32> to vector<8x128xf32>
    %248 = vector.extract_strided_slice %226 {offsets = [0, 256], sizes = [8, 128], strides = [1, 1]} : vector<8x384xf32> to vector<8x128xf32>
    %249 = arith.mulf %236, %248 : vector<8x128xf32>
    %250 = arith.addf %247, %249 : vector<8x128xf32>
    %251 = math.tanh %250 : vector<8x128xf32>
    %cst_80 = arith.constant 1.000000e+00 : f32
    %252 = vector.broadcast %cst_80 : f32 to vector<8x128xf32>
    %253 = arith.subf %252, %246 : vector<8x128xf32>
    %254 = arith.mulf %253, %251 : vector<8x128xf32>
    %255 = arith.mulf %246, %219 : vector<8x128xf32>
    %256 = arith.addf %254, %255 : vector<8x128xf32>
    %c5_i32 = arith.constant 5 : i32
    %257 = vector.broadcast %c5_i32 : i32 to vector<8x1xi32>
    %258 = arith.cmpi eq, %37, %257 : vector<8x1xi32>
    %259 = vector.shape_cast %258 : vector<8x1xi1> to vector<8x1xi1>
    %260 = vector.broadcast %259 : vector<8x1xi1> to vector<8x128xi1>
    %261 = arith.select %260, %256, %224 : vector<8x128xi1>, vector<8x128xf32>
    %c48 = arith.constant 48 : index
    %c0_81 = arith.constant 0 : index
    %262 = vector.load %arg11[%c48, %c0_81] : memref<64x384xf32, #tpu.memory_space<vmem>>, vector<8x384xf32>
    %cst_82 = arith.constant dense<0.000000e+00> : vector<8x384xf32>
    %263 = tpu.matmul %256, %36, %cst_82 {dimension_numbers = #tpu.dot_dimension_numbers<[1], [0], [0], [1], [0, 0, 1, 1], [], []>} : vector<8x128xf32>, vector<128x384xf32>, vector<8x384xf32> -> vector<8x384xf32>
    %264 = vector.extract_strided_slice %262 {offsets = [0, 0], sizes = [8, 128], strides = [1, 1]} : vector<8x384xf32> to vector<8x128xf32>
    %265 = vector.extract_strided_slice %263 {offsets = [0, 0], sizes = [8, 128], strides = [1, 1]} : vector<8x384xf32> to vector<8x128xf32>
    %266 = arith.addf %264, %265 : vector<8x128xf32>
    %cst_83 = arith.constant 0.000000e+00 : f32
    %267 = vector.broadcast %cst_83 : f32 to vector<8x128xf32>
    %268 = arith.subf %267, %266 : vector<8x128xf32>
    %269 = math.exp %268 : vector<8x128xf32>
    %cst_84 = arith.constant 1.000000e+00 : f32
    %270 = vector.broadcast %cst_84 : f32 to vector<8x128xf32>
    %271 = arith.addf %270, %269 : vector<8x128xf32>
    %cst_85 = arith.constant 1.000000e+00 : f32
    %272 = vector.broadcast %cst_85 : f32 to vector<8x128xf32>
    %273 = arith.divf %272, %271 : vector<8x128xf32>
    %274 = vector.extract_strided_slice %262 {offsets = [0, 128], sizes = [8, 128], strides = [1, 1]} : vector<8x384xf32> to vector<8x128xf32>
    %275 = vector.extract_strided_slice %263 {offsets = [0, 128], sizes = [8, 128], strides = [1, 1]} : vector<8x384xf32> to vector<8x128xf32>
    %276 = arith.addf %274, %275 : vector<8x128xf32>
    %cst_86 = arith.constant 0.000000e+00 : f32
    %277 = vector.broadcast %cst_86 : f32 to vector<8x128xf32>
    %278 = arith.subf %277, %276 : vector<8x128xf32>
    %279 = math.exp %278 : vector<8x128xf32>
    %cst_87 = arith.constant 1.000000e+00 : f32
    %280 = vector.broadcast %cst_87 : f32 to vector<8x128xf32>
    %281 = arith.addf %280, %279 : vector<8x128xf32>
    %cst_88 = arith.constant 1.000000e+00 : f32
    %282 = vector.broadcast %cst_88 : f32 to vector<8x128xf32>
    %283 = arith.divf %282, %281 : vector<8x128xf32>
    %284 = vector.extract_strided_slice %262 {offsets = [0, 256], sizes = [8, 128], strides = [1, 1]} : vector<8x384xf32> to vector<8x128xf32>
    %285 = vector.extract_strided_slice %263 {offsets = [0, 256], sizes = [8, 128], strides = [1, 1]} : vector<8x384xf32> to vector<8x128xf32>
    %286 = arith.mulf %273, %285 : vector<8x128xf32>
    %287 = arith.addf %284, %286 : vector<8x128xf32>
    %288 = math.tanh %287 : vector<8x128xf32>
    %cst_89 = arith.constant 1.000000e+00 : f32
    %289 = vector.broadcast %cst_89 : f32 to vector<8x128xf32>
    %290 = arith.subf %289, %283 : vector<8x128xf32>
    %291 = arith.mulf %290, %288 : vector<8x128xf32>
    %292 = arith.mulf %283, %256 : vector<8x128xf32>
    %293 = arith.addf %291, %292 : vector<8x128xf32>
    %c6_i32 = arith.constant 6 : i32
    %294 = vector.broadcast %c6_i32 : i32 to vector<8x1xi32>
    %295 = arith.cmpi eq, %37, %294 : vector<8x1xi32>
    %296 = vector.shape_cast %295 : vector<8x1xi1> to vector<8x1xi1>
    %297 = vector.broadcast %296 : vector<8x1xi1> to vector<8x128xi1>
    %298 = arith.select %297, %293, %261 : vector<8x128xi1>, vector<8x128xf32>
    %c56 = arith.constant 56 : index
    %c0_90 = arith.constant 0 : index
    %299 = vector.load %arg11[%c56, %c0_90] : memref<64x384xf32, #tpu.memory_space<vmem>>, vector<8x384xf32>
    %cst_91 = arith.constant dense<0.000000e+00> : vector<8x384xf32>
    %300 = tpu.matmul %293, %36, %cst_91 {dimension_numbers = #tpu.dot_dimension_numbers<[1], [0], [0], [1], [0, 0, 1, 1], [], []>} : vector<8x128xf32>, vector<128x384xf32>, vector<8x384xf32> -> vector<8x384xf32>
    %301 = vector.extract_strided_slice %299 {offsets = [0, 0], sizes = [8, 128], strides = [1, 1]} : vector<8x384xf32> to vector<8x128xf32>
    %302 = vector.extract_strided_slice %300 {offsets = [0, 0], sizes = [8, 128], strides = [1, 1]} : vector<8x384xf32> to vector<8x128xf32>
    %303 = arith.addf %301, %302 : vector<8x128xf32>
    %cst_92 = arith.constant 0.000000e+00 : f32
    %304 = vector.broadcast %cst_92 : f32 to vector<8x128xf32>
    %305 = arith.subf %304, %303 : vector<8x128xf32>
    %306 = math.exp %305 : vector<8x128xf32>
    %cst_93 = arith.constant 1.000000e+00 : f32
    %307 = vector.broadcast %cst_93 : f32 to vector<8x128xf32>
    %308 = arith.addf %307, %306 : vector<8x128xf32>
    %cst_94 = arith.constant 1.000000e+00 : f32
    %309 = vector.broadcast %cst_94 : f32 to vector<8x128xf32>
    %310 = arith.divf %309, %308 : vector<8x128xf32>
    %311 = vector.extract_strided_slice %299 {offsets = [0, 128], sizes = [8, 128], strides = [1, 1]} : vector<8x384xf32> to vector<8x128xf32>
    %312 = vector.extract_strided_slice %300 {offsets = [0, 128], sizes = [8, 128], strides = [1, 1]} : vector<8x384xf32> to vector<8x128xf32>
    %313 = arith.addf %311, %312 : vector<8x128xf32>
    %cst_95 = arith.constant 0.000000e+00 : f32
    %314 = vector.broadcast %cst_95 : f32 to vector<8x128xf32>
    %315 = arith.subf %314, %313 : vector<8x128xf32>
    %316 = math.exp %315 : vector<8x128xf32>
    %cst_96 = arith.constant 1.000000e+00 : f32
    %317 = vector.broadcast %cst_96 : f32 to vector<8x128xf32>
    %318 = arith.addf %317, %316 : vector<8x128xf32>
    %cst_97 = arith.constant 1.000000e+00 : f32
    %319 = vector.broadcast %cst_97 : f32 to vector<8x128xf32>
    %320 = arith.divf %319, %318 : vector<8x128xf32>
    %321 = vector.extract_strided_slice %299 {offsets = [0, 256], sizes = [8, 128], strides = [1, 1]} : vector<8x384xf32> to vector<8x128xf32>
    %322 = vector.extract_strided_slice %300 {offsets = [0, 256], sizes = [8, 128], strides = [1, 1]} : vector<8x384xf32> to vector<8x128xf32>
    %323 = arith.mulf %310, %322 : vector<8x128xf32>
    %324 = arith.addf %321, %323 : vector<8x128xf32>
    %325 = math.tanh %324 : vector<8x128xf32>
    %cst_98 = arith.constant 1.000000e+00 : f32
    %326 = vector.broadcast %cst_98 : f32 to vector<8x128xf32>
    %327 = arith.subf %326, %320 : vector<8x128xf32>
    %328 = arith.mulf %327, %325 : vector<8x128xf32>
    %329 = arith.mulf %320, %293 : vector<8x128xf32>
    %330 = arith.addf %328, %329 : vector<8x128xf32>
    %c7_i32 = arith.constant 7 : i32
    %331 = vector.broadcast %c7_i32 : i32 to vector<8x1xi32>
    %332 = arith.cmpi eq, %37, %331 : vector<8x1xi32>
    %333 = vector.shape_cast %332 : vector<8x1xi1> to vector<8x1xi1>
    %334 = vector.broadcast %333 : vector<8x1xi1> to vector<8x128xi1>
    %335 = arith.select %334, %330, %298 : vector<8x128xi1>, vector<8x128xf32>
    %c0_99 = arith.constant 0 : index
    %c0_100 = arith.constant 0 : index
    %336 = vector.load %arg5[%c0_99, %c0_100] : memref<128x32xf32, #tpu.memory_space<vmem>>, vector<128x32xf32>
    %cst_101 = arith.constant dense<0.000000e+00> : vector<8x32xf32>
    %337 = tpu.matmul %335, %336, %cst_101 {dimension_numbers = #tpu.dot_dimension_numbers<[1], [0], [0], [1], [0, 0, 1, 1], [], []>} : vector<8x128xf32>, vector<128x32xf32>, vector<8x32xf32> -> vector<8x32xf32>
    %c0_102 = arith.constant 0 : index
    %c0_103 = arith.constant 0 : index
    %338 = vector.load %arg6[%c0_102, %c0_103] : memref<1x32xf32, #tpu.memory_space<vmem>>, vector<1x32xf32>
    %339 = vector.broadcast %338 : vector<1x32xf32> to vector<8x32xf32>
    %340 = arith.addf %337, %339 : vector<8x32xf32>
    %cst_104 = arith.constant 0.000000e+00 : f32
    %341 = vector.broadcast %cst_104 : f32 to vector<1x1xf32>
    %342 = vector.extract_strided_slice %31 {offsets = [64, 0], sizes = [8, 32], strides = [1, 1]} : vector<80x32xf32> to vector<8x32xf32>
    %343 = vector.extract_strided_slice %340 {offsets = [0, 0], sizes = [1, 32], strides = [1, 1]} : vector<8x32xf32> to vector<1x32xf32>
    %cst_105 = arith.constant dense<0.000000e+00> : vector<1x8xf32>
    %344 = tpu.matmul %343, %342, %cst_105 {dimension_numbers = #tpu.dot_dimension_numbers<[1], [1], [0], [0], [0, 0, 1, 0], [], []>} : vector<1x32xf32>, vector<8x32xf32>, vector<1x8xf32> -> vector<1x8xf32>
    %345 = vector.extract_strided_slice %344 {offsets = [0, 0], sizes = [1, 4], strides = [1, 1]} : vector<1x8xf32> to vector<1x4xf32>
    %c0_106 = arith.constant 0 : index
    %c0_107 = arith.constant 0 : index
    %346 = vector.load %arg9[%c0_106, %c0_107] : memref<2x4xf32, #tpu.memory_space<vmem>>, vector<1x4xf32>
    tpu.vector_store %arg9[%c0_106, %c0_107], %345 {strides = array<i32>} : memref<2x4xf32, #tpu.memory_space<vmem>>, vector<1x4xf32>,
    %cst_108 = arith.constant dense<0xFF800000> : vector<1xf32>
    %347 = vector.multi_reduction <maximumf>, %345, %cst_108 [1] : vector<1x4xf32> to vector<1xf32>
    %348 = vector.shape_cast %347 : vector<1xf32> to vector<1x1xf32>
    %349 = vector.broadcast %348 : vector<1x1xf32> to vector<1x4xf32>
    %350 = arith.subf %345, %349 : vector<1x4xf32>
    %351 = math.exp %350 : vector<1x4xf32>
    %cst_109 = arith.constant dense<0.000000e+00> : vector<1xf32>
    %352 = vector.multi_reduction <add>, %351, %cst_109 [1] : vector<1x4xf32> to vector<1xf32>
    %353 = vector.shape_cast %352 : vector<1xf32> to vector<1x1xf32>
    %354 = math.log %353 : vector<1x1xf32>
    %355 = arith.addf %348, %354 : vector<1x1xf32>
    %356 = tpu.iota {dimensions = array<i32: 1>} : vector<1x4xi32>
    %c0_110 = arith.constant 0 : index
    %c0_111 = arith.constant 0 : index
    %357 = vector.load %arg8[%c0_110, %c0_111] : memref<2x1xi32, #tpu.memory_space<vmem>>, vector<1x1xi32>
    %358 = vector.broadcast %357 : vector<1x1xi32> to vector<1x4xi32>
    %359 = arith.cmpi eq, %356, %358 : vector<1x4xi32>
    %cst_112 = arith.constant 0.000000e+00 : f32
    %360 = vector.broadcast %cst_112 : f32 to vector<1x4xf32>
    %361 = arith.select %359, %345, %360 : vector<1x4xi1>, vector<1x4xf32>
    %cst_113 = arith.constant dense<0.000000e+00> : vector<1xf32>
    %362 = vector.multi_reduction <add>, %361, %cst_113 [1] : vector<1x4xf32> to vector<1xf32>
    %363 = vector.shape_cast %362 : vector<1xf32> to vector<1x1xf32>
    %364 = arith.subf %355, %363 : vector<1x1xf32>
    %365 = arith.addf %341, %364 : vector<1x1xf32>
    %366 = vector.extract_strided_slice %31 {offsets = [72, 0], sizes = [8, 32], strides = [1, 1]} : vector<80x32xf32> to vector<8x32xf32>
    %367 = vector.extract_strided_slice %340 {offsets = [1, 0], sizes = [1, 32], strides = [1, 1]} : vector<8x32xf32> to vector<1x32xf32>
    %cst_114 = arith.constant dense<0.000000e+00> : vector<1x8xf32>
    %368 = tpu.matmul %367, %366, %cst_114 {dimension_numbers = #tpu.dot_dimension_numbers<[1], [1], [0], [0], [0, 0, 1, 0], [], []>} : vector<1x32xf32>, vector<8x32xf32>, vector<1x8xf32> -> vector<1x8xf32>
    %369 = vector.extract_strided_slice %368 {offsets = [0, 0], sizes = [1, 4], strides = [1, 1]} : vector<1x8xf32> to vector<1x4xf32>
    %c1_115 = arith.constant 1 : index
    %c0_116 = arith.constant 0 : index
    %370 = vector.load %arg9[%c1_115, %c0_116] : memref<2x4xf32, #tpu.memory_space<vmem>>, vector<1x4xf32>
    tpu.vector_store %arg9[%c1_115, %c0_116], %369 {strides = array<i32>} : memref<2x4xf32, #tpu.memory_space<vmem>>, vector<1x4xf32>,
    %cst_117 = arith.constant dense<0xFF800000> : vector<1xf32>
    %371 = vector.multi_reduction <maximumf>, %369, %cst_117 [1] : vector<1x4xf32> to vector<1xf32>
    %372 = vector.shape_cast %371 : vector<1xf32> to vector<1x1xf32>
    %373 = vector.broadcast %372 : vector<1x1xf32> to vector<1x4xf32>
    %374 = arith.subf %369, %373 : vector<1x4xf32>
    %375 = math.exp %374 : vector<1x4xf32>
    %cst_118 = arith.constant dense<0.000000e+00> : vector<1xf32>
    %376 = vector.multi_reduction <add>, %375, %cst_118 [1] : vector<1x4xf32> to vector<1xf32>
    %377 = vector.shape_cast %376 : vector<1xf32> to vector<1x1xf32>
    %378 = math.log %377 : vector<1x1xf32>
    %379 = arith.addf %372, %378 : vector<1x1xf32>
    %380 = tpu.iota {dimensions = array<i32: 1>} : vector<1x4xi32>
    %c1_119 = arith.constant 1 : index
    %c0_120 = arith.constant 0 : index
    %381 = vector.load %arg8[%c1_119, %c0_120] : memref<2x1xi32, #tpu.memory_space<vmem>>, vector<1x1xi32>
    %382 = vector.broadcast %381 : vector<1x1xi32> to vector<1x4xi32>
    %383 = arith.cmpi eq, %380, %382 : vector<1x4xi32>
    %cst_121 = arith.constant 0.000000e+00 : f32
    %384 = vector.broadcast %cst_121 : f32 to vector<1x4xf32>
    %385 = arith.select %383, %369, %384 : vector<1x4xi1>, vector<1x4xf32>
    %cst_122 = arith.constant dense<0.000000e+00> : vector<1xf32>
    %386 = vector.multi_reduction <add>, %385, %cst_122 [1] : vector<1x4xf32> to vector<1xf32>
    %387 = vector.shape_cast %386 : vector<1xf32> to vector<1x1xf32>
    %388 = arith.subf %379, %387 : vector<1x1xf32>
    %389 = arith.addf %365, %388 : vector<1x1xf32>
    %cst_123 = arith.constant 5.000000e-01 : f32
    %390 = vector.broadcast %cst_123 : f32 to vector<1x1xf32>
    %391 = arith.mulf %389, %390 : vector<1x1xf32>
    %c0_124 = arith.constant 0 : index
    %c0_125 = arith.constant 0 : index
    %392 = vector.load %arg10[%c0_124, %c0_125] : memref<1x1xf32, #tpu.memory_space<vmem>>, vector<1x1xf32>
    tpu.vector_store %arg10[%c0_124, %c0_125], %391 {strides = array<i32>} : memref<1x1xf32, #tpu.memory_space<vmem>>, vector<1x1xf32>,
    return
  }
  func.func @transform_0(%arg0: i32) -> (i32, i32) {
    %c0_i32 = arith.constant 0 : i32
    %c0_i32_0 = arith.constant 0 : i32
    %c0_i32_1 = arith.constant 0 : i32
    return %c0_i32, %c0_i32_0 : i32, i32
  }
  func.func @transform_1(%arg0: i32) -> (i32, i32) {
    %c0_i32 = arith.constant 0 : i32
    %c0_i32_0 = arith.constant 0 : i32
    %c0_i32_1 = arith.constant 0 : i32
    return %c0_i32, %c0_i32_0 : i32, i32
  }
  func.func @transform_2(%arg0: i32) -> (i32, i32) {
    %c0_i32 = arith.constant 0 : i32
    %c0_i32_0 = arith.constant 0 : i32
    %c0_i32_1 = arith.constant 0 : i32
    return %c0_i32, %c0_i32_0 : i32, i32
  }
  func.func @transform_3(%arg0: i32) -> (i32, i32) {
    %c0_i32 = arith.constant 0 : i32
    %c0_i32_0 = arith.constant 0 : i32
    %c0_i32_1 = arith.constant 0 : i32
    return %c0_i32, %c0_i32_0 : i32, i32
  }
  func.func @transform_4(%arg0: i32) -> (i32, i32) {
    %c0_i32 = arith.constant 0 : i32
    %c0_i32_0 = arith.constant 0 : i32
    %c0_i32_1 = arith.constant 0 : i32
    return %c0_i32, %c0_i32_0 : i32, i32
  }
  func.func @transform_5(%arg0: i32) -> (i32, i32) {
    %c0_i32 = arith.constant 0 : i32
    %c0_i32_0 = arith.constant 0 : i32
    %c0_i32_1 = arith.constant 0 : i32
    return %c0_i32, %c0_i32_0 : i32, i32
  }
  func.func @transform_6(%arg0: i32) -> (i32, i32) {
    %c0_i32 = arith.constant 0 : i32
    %c0_i32_0 = arith.constant 0 : i32
    %c0_i32_1 = arith.constant 0 : i32
    return %c0_i32, %c0_i32_0 : i32, i32
  }
  func.func @transform_7(%arg0: i32) -> (i32, i32) {
    %c0_i32 = arith.constant 0 : i32
    %c0_i32_0 = arith.constant 0 : i32
    %c0_i32_1 = arith.constant 0 : i32
    return %c0_i32, %c0_i32_0 : i32, i32
  }
  func.func @transform_8(%arg0: i32) -> (i32, i32) {
    %c0_i32 = arith.constant 0 : i32
    %c0_i32_0 = arith.constant 0 : i32
    %c0_i32_1 = arith.constant 0 : i32
    return %c0_i32, %c0_i32_0 : i32, i32
  }
  func.func @transform_9(%arg0: i32) -> (i32, i32) {
    %c0_i32 = arith.constant 0 : i32
    %c0_i32_0 = arith.constant 0 : i32
    %c0_i32_1 = arith.constant 0 : i32
    return %c0_i32, %c0_i32_0 : i32, i32
  }
}

</mosaic_0001>

<llo_original>
// kernel: _gru4rec_forward.1
$region0: #{_gru4rec_forward.1}
  #allocation0 [shape = 'u32[]', space=smem, size = 0x4, offset = 0x4, fixed_abs, tag = 'smem constant byte address 0x4 - core index']
  #allocation1 [shape = 'u32[72,128]{1,0:T(1,128)}', space=vmem, size = 0x9000, scoped, tag = 'internal scratch']
  #allocation2 [shape = 'f32[64,384]{1,0:T(8,128)}', space=vmem, size = 0x18000, scoped, tag = 'scratch operand']
  %s0 = inlined_call_operand.vmem [shape: s32[80,4], index: 0, kind: input, shape index: {}]
  %s1 = inlined_call_operand.vmem [shape: f32[128,32], index: 1, kind: input, shape index: {}]
  %s2 = inlined_call_operand.vmem [shape: f32[32,384], index: 2, kind: input, shape index: {}]
  %s3 = inlined_call_operand.hbm [shape: f32[128,384], index: 3, kind: input, shape index: {}]
  %s4 = inlined_call_operand.vmem [shape: f32[128,32], index: 4, kind: input, shape index: {}]
  %s5 = inlined_call_operand.vmem [shape: f32[1,32], index: 5, kind: input, shape index: {}]
  %s6 = inlined_call_operand.vmem [shape: s32[8,1], index: 6, kind: input, shape index: {}]
  %s7 = inlined_call_operand.vmem [shape: s32[2,1], index: 7, kind: input, shape index: {}]
  %s8 = inlined_call_operand.hbm [shape: f32[2,4], index: 8, kind: output, shape index: {0}]
  %s9 = inlined_call_operand.hbm [shape: f32[1,1], index: 9, kind: output, shape index: {1}]
  %10 = xla_tuple %s8, %s9
  %s11 = sld [smem:[#allocation0]]
  $region54: #{_gru4rec_forward.1} parent=0
    _
  %s13 = ssub.s32 1, %s11
  %s14 = scalar_select 0, %s13, %s11
  $region1: #{_gru4rec_forward.1} parent=0
    #allocation3 [shape = 'u8[196608]{0}', space=vmem, size = 0x30000, scoped, tag = 'input window, operand 3, single buffered']
    #allocation4 [shape = 's32[1]{0}', space=sflag, size = 0x4, scoped, tag = 'scoped memory for _gru4rec_forward.1']
    #allocation5 [shape = 's32[1]{0}', space=sflag, size = 0x4, scoped, tag = 'scoped memory for _gru4rec_forward.1']
    #allocation6 [shape = 'u8[1024]{0}', space=vmem, size = 0x400, scoped, tag = 'output window, operand 0, single buffered']
    #allocation7 [shape = 'u8[512]{0}', space=vmem, size = 0x400, scoped, tag = 'output window, operand 1, single buffered']
    #allocation8 [shape = 's32[1]{0}', space=sflag, size = 0x4, scoped, tag = 'scoped memory for _gru4rec_forward.1']
    %15 = vsyncpa [#allocation4], 0
    %16 = vsyncpa [#allocation5], 0
    %17 = vsyncpa [#allocation8], 0
    // Predicated region
    $region2: #{_gru4rec_forward.1} parent=1 // pred_check
      _
    $region3: #{_gru4rec_forward.1} parent=1 // pred_check_branch
      %19 = sbr.rel (0) target = $region5
    $region4: #{_gru4rec_forward.1} parent=1 // pred_region
      _
    $region5: #{_gru4rec_forward.1} parent=1 // pred_fallthru
      _
    // Predicated region
    $region6: #{_gru4rec_forward.1} parent=1 // pred_check
      _
    $region7: #{_gru4rec_forward.1} parent=1 // pred_check_branch
      %21 = sbr.rel (0) target = $region9
    $region8: #{_gru4rec_forward.1} parent=1 // pred_region
      _
    $region9: #{_gru4rec_forward.1} parent=1 // pred_fallthru
      _
    // Predicated region
    $region10: #{_gru4rec_forward.1} parent=1 // pred_check
      _
    $region11: #{_gru4rec_forward.1} parent=1 // pred_check_branch
      %23 = sbr.rel (0) target = $region13
    $region12: #{_gru4rec_forward.1} parent=1 // pred_region
      _
    $region13: #{_gru4rec_forward.1} parent=1 // pred_fallthru
      _
    // Predicated region
    $region14: #{_gru4rec_forward.1} parent=1 // pred_check
      _
    $region15: #{_gru4rec_forward.1} parent=1 // pred_check_branch
      %25 = sbr.rel (0) target = $region17
    $region16: #{_gru4rec_forward.1} parent=1 // pred_region
      %27 = vsyncadd [#allocation4], 0
      %s28 = sshll.u32 %s3, 4
      %s29 = int_to_ptr.hbm [resolvable:$true] %s28
      %s30 = sshll.u32 [#allocation3], 4
      %s31 = int_to_ptr.vmem [resolvable:$true] %s30
      %36 = dma.hbm_to_vmem [thread:$0]  %s29, 6144, %s31, [#allocation4], 384, 384, 24
    $region17: #{_gru4rec_forward.1} parent=1 // pred_fallthru
      _
    // Predicated region
    $region18: #{_gru4rec_forward.1} parent=1 // pred_check
      _
    $region19: #{_gru4rec_forward.1} parent=1 // pred_check_branch
      %38 = sbr.rel (0) target = $region21
    $region20: #{_gru4rec_forward.1} parent=1 // pred_region
      _
    $region21: #{_gru4rec_forward.1} parent=1 // pred_fallthru
      _
    // Predicated region
    $region22: #{_gru4rec_forward.1} parent=1 // pred_check
      _
    $region23: #{_gru4rec_forward.1} parent=1 // pred_check_branch
      %40 = sbr.rel (0) target = $region25
    $region24: #{_gru4rec_forward.1} parent=1 // pred_region
      _
    $region25: #{_gru4rec_forward.1} parent=1 // pred_fallthru
      _
    // Predicated region
    $region26: #{_gru4rec_forward.1} parent=1 // pred_check
      _
    $region27: #{_gru4rec_forward.1} parent=1 // pred_check_branch
      %42 = sbr.rel (0) target = $region29
    $region28: #{_gru4rec_forward.1} parent=1 // pred_region
      _
    $region29: #{_gru4rec_forward.1} parent=1 // pred_fallthru
      _
    // Predicated region
    $region30: #{_gru4rec_forward.1} parent=1 // pred_check
      _
    $region31: #{_gru4rec_forward.1} parent=1 // pred_check_branch
      %44 = sbr.rel (0) target = $region33
    $region32: #{_gru4rec_forward.1} parent=1 // pred_region
      _
    $region33: #{_gru4rec_forward.1} parent=1 // pred_fallthru
      _
    // Predicated region
    $region34: #{_gru4rec_forward.1} parent=1 // pred_check
      _
    $region35: #{_gru4rec_forward.1} parent=1 // pred_check_branch
      %46 = sbr.rel (0) target = $region37
    $region36: #{_gru4rec_forward.1} parent=1 // pred_region
      %48 = dma.done [#allocation4], 6144
    $region37: #{_gru4rec_forward.1} parent=1 // pred_fallthru
      _
    %v49 = vlaneseq
    %v50 = vand.u32 %v49, 127
    %v51 = vld [vmem:[%s0] sm:$0xff]
    %v52 = vld [vmem:[%s0 + $0x8] sm:$0xff]
    %v53 = vld [vmem:[%s0 + $0x10] sm:$0xff]
    %v54 = vld [vmem:[%s0 + $0x18] sm:$0xff]
    %v55 = vld [vmem:[%s0 + $0x20] sm:$0xff]
    %v56 = vld [vmem:[%s0 + $0x28] sm:$0xff]
    %v57 = vld [vmem:[%s0 + $0x30] sm:$0xff]
    %v58 = vld [vmem:[%s0 + $0x38] sm:$0xff]
    %v59 = vld [vmem:[%s0 + $0x40] sm:$0xff]
    %v60 = vld [vmem:[%s0 + $0x48] sm:$0xff]
    %61 = vset.pattern.permute.xlu0 0
    %62 = vperm.xlu0 %61, %v51
    %v63 = vpop.permute.xlu0 %62
    %64 = vset.pattern.permute.xlu0 0
    %65 = vperm.xlu0 %64, %v52
    %v66 = vpop.permute.xlu0 %65
    %67 = vset.pattern.permute.xlu0 0
    %68 = vperm.xlu0 %67, %v53
    %v69 = vpop.permute.xlu0 %68
    %70 = vset.pattern.permute.xlu0 0
    %71 = vperm.xlu0 %70, %v54
    %v72 = vpop.permute.xlu0 %71
    %73 = vset.pattern.permute.xlu0 0
    %74 = vperm.xlu0 %73, %v55
    %v75 = vpop.permute.xlu0 %74
    %76 = vset.pattern.permute.xlu0 0
    %77 = vperm.xlu0 %76, %v56
    %v78 = vpop.permute.xlu0 %77
    %79 = vset.pattern.permute.xlu0 0
    %80 = vperm.xlu0 %79, %v57
    %v81 = vpop.permute.xlu0 %80
    %82 = vset.pattern.permute.xlu0 0
    %83 = vperm.xlu0 %82, %v58
    %v84 = vpop.permute.xlu0 %83
    %85 = vset.pattern.permute.xlu0 0
    %86 = vperm.xlu0 %85, %v59
    %v87 = vpop.permute.xlu0 %86
    %88 = vset.pattern.permute.xlu0 0
    %89 = vperm.xlu0 %88, %v60
    %v90 = vpop.permute.xlu0 %89
    %vm91 = vcmp.eq.s32.totalorder %v50, %v63
    %vm92 = vcmp.eq.s32.totalorder %v50, %v66
    %vm93 = vcmp.eq.s32.totalorder %v50, %v69
    %vm94 = vcmp.eq.s32.totalorder %v50, %v72
    %vm95 = vcmp.eq.s32.totalorder %v50, %v75
    %vm96 = vcmp.eq.s32.totalorder %v50, %v78
    %vm97 = vcmp.eq.s32.totalorder %v50, %v81
    %vm98 = vcmp.eq.s32.totalorder %v50, %v84
    %vm99 = vcmp.eq.s32.totalorder %v50, %v87
    %vm100 = vcmp.eq.s32.totalorder %v50, %v90
    %v101 = vsel %vm91, 0.25, 0.0
    %v102 = vsel %vm92, 0.25, 0.0
    %v103 = vsel %vm93, 0.25, 0.0
    %v104 = vsel %vm94, 0.25, 0.0
    %v105 = vsel %vm95, 0.25, 0.0
    %v106 = vsel %vm96, 0.25, 0.0
    %v107 = vsel %vm97, 0.25, 0.0
    %v108 = vsel %vm98, 0.25, 0.0
    %v109 = vsel %vm99, 0.25, 0.0
    %v110 = vsel %vm100, 0.25, 0.0
    %v111 = vadd.f32 %v101, 0.0
    %v112 = vadd.f32 %v102, 0.0
    %v113 = vadd.f32 %v103, 0.0
    %v114 = vadd.f32 %v104, 0.0
    %v115 = vadd.f32 %v105, 0.0
    %v116 = vadd.f32 %v106, 0.0
    %v117 = vadd.f32 %v107, 0.0
    %v118 = vadd.f32 %v108, 0.0
    %v119 = vadd.f32 %v109, 0.0
    %v120 = vadd.f32 %v110, 0.0
    %121 = vset.pattern.permute.xlu0 1
    %122 = vperm.xlu0 %121, %v51
    %v123 = vpop.permute.xlu0 %122
    %124 = vset.pattern.permute.xlu0 1
    %125 = vperm.xlu0 %124, %v52
    %v126 = vpop.permute.xlu0 %125
    %127 = vset.pattern.permute.xlu0 1
    %128 = vperm.xlu0 %127, %v53
    %v129 = vpop.permute.xlu0 %128
    %130 = vset.pattern.permute.xlu0 1
    %131 = vperm.xlu0 %130, %v54
    %v132 = vpop.permute.xlu0 %131
    %133 = vset.pattern.permute.xlu0 1
    %134 = vperm.xlu0 %133, %v55
    %v135 = vpop.permute.xlu0 %134
    %136 = vset.pattern.permute.xlu0 1
    %137 = vperm.xlu0 %136, %v56
    %v138 = vpop.permute.xlu0 %137
    %139 = vset.pattern.permute.xlu0 1
    %140 = vperm.xlu0 %139, %v57
    %v141 = vpop.permute.xlu0 %140
    %142 = vset.pattern.permute.xlu0 1
    %143 = vperm.xlu0 %142, %v58
    %v144 = vpop.permute.xlu0 %143
    %145 = vset.pattern.permute.xlu0 1
    %146 = vperm.xlu0 %145, %v59
    %v147 = vpop.permute.xlu0 %146
    %148 = vset.pattern.permute.xlu0 1
    %149 = vperm.xlu0 %148, %v60
    %v150 = vpop.permute.xlu0 %149
    %vm151 = vcmp.eq.s32.totalorder %v50, %v123
    %vm152 = vcmp.eq.s32.totalorder %v50, %v126
    %vm153 = vcmp.eq.s32.totalorder %v50, %v129
    %vm154 = vcmp.eq.s32.totalorder %v50, %v132
    %vm155 = vcmp.eq.s32.totalorder %v50, %v135
    %vm156 = vcmp.eq.s32.totalorder %v50, %v138
    %vm157 = vcmp.eq.s32.totalorder %v50, %v141
    %vm158 = vcmp.eq.s32.totalorder %v50, %v144
    %vm159 = vcmp.eq.s32.totalorder %v50, %v147
    %vm160 = vcmp.eq.s32.totalorder %v50, %v150
    %v161 = vsel %vm151, 0.25, 0.0
    %v162 = vsel %vm152, 0.25, 0.0
    %v163 = vsel %vm153, 0.25, 0.0
    %v164 = vsel %vm154, 0.25, 0.0
    %v165 = vsel %vm155, 0.25, 0.0
    %v166 = vsel %vm156, 0.25, 0.0
    %v167 = vsel %vm157, 0.25, 0.0
    %v168 = vsel %vm158, 0.25, 0.0
    %v169 = vsel %vm159, 0.25, 0.0
    %v170 = vsel %vm160, 0.25, 0.0
    %v171 = vadd.f32 %v111, %v161
    %v172 = vadd.f32 %v112, %v162
    %v173 = vadd.f32 %v113, %v163
    %v174 = vadd.f32 %v114, %v164
    %v175 = vadd.f32 %v115, %v165
    %v176 = vadd.f32 %v116, %v166
    %v177 = vadd.f32 %v117, %v167
    %v178 = vadd.f32 %v118, %v168
    %v179 = vadd.f32 %v119, %v169
    %v180 = vadd.f32 %v120, %v170
    %181 = vset.pattern.permute.xlu0 2
    %182 = vperm.xlu0 %181, %v51
    %v183 = vpop.permute.xlu0 %182
    %184 = vset.pattern.permute.xlu0 2
    %185 = vperm.xlu0 %184, %v52
    %v186 = vpop.permute.xlu0 %185
    %187 = vset.pattern.permute.xlu0 2
    %188 = vperm.xlu0 %187, %v53
    %v189 = vpop.permute.xlu0 %188
    %190 = vset.pattern.permute.xlu0 2
    %191 = vperm.xlu0 %190, %v54
    %v192 = vpop.permute.xlu0 %191
    %193 = vset.pattern.permute.xlu0 2
    %194 = vperm.xlu0 %193, %v55
    %v195 = vpop.permute.xlu0 %194
    %196 = vset.pattern.permute.xlu0 2
    %197 = vperm.xlu0 %196, %v56
    %v198 = vpop.permute.xlu0 %197
    %199 = vset.pattern.permute.xlu0 2
    %200 = vperm.xlu0 %199, %v57
    %v201 = vpop.permute.xlu0 %200
    %202 = vset.pattern.permute.xlu0 2
    %203 = vperm.xlu0 %202, %v58
    %v204 = vpop.permute.xlu0 %203
    %205 = vset.pattern.permute.xlu0 2
    %206 = vperm.xlu0 %205, %v59
    %v207 = vpop.permute.xlu0 %206
    %208 = vset.pattern.permute.xlu0 2
    %209 = vperm.xlu0 %208, %v60
    %v210 = vpop.permute.xlu0 %209
    %vm211 = vcmp.eq.s32.totalorder %v50, %v183
    %vm212 = vcmp.eq.s32.totalorder %v50, %v186
    %vm213 = vcmp.eq.s32.totalorder %v50, %v189
    %vm214 = vcmp.eq.s32.totalorder %v50, %v192
    %vm215 = vcmp.eq.s32.totalorder %v50, %v195
    %vm216 = vcmp.eq.s32.totalorder %v50, %v198
    %vm217 = vcmp.eq.s32.totalorder %v50, %v201
    %vm218 = vcmp.eq.s32.totalorder %v50, %v204
    %vm219 = vcmp.eq.s32.totalorder %v50, %v207
    %vm220 = vcmp.eq.s32.totalorder %v50, %v210
    %v221 = vsel %vm211, 0.25, 0.0
    %v222 = vsel %vm212, 0.25, 0.0
    %v223 = vsel %vm213, 0.25, 0.0
    %v224 = vsel %vm214, 0.25, 0.0
    %v225 = vsel %vm215, 0.25, 0.0
    %v226 = vsel %vm216, 0.25, 0.0
    %v227 = vsel %vm217, 0.25, 0.0
    %v228 = vsel %vm218, 0.25, 0.0
    %v229 = vsel %vm219, 0.25, 0.0
    %v230 = vsel %vm220, 0.25, 0.0
    %v231 = vadd.f32 %v171, %v221
    %v232 = vadd.f32 %v172, %v222
    %v233 = vadd.f32 %v173, %v223
    %v234 = vadd.f32 %v174, %v224
    %v235 = vadd.f32 %v175, %v225
    %v236 = vadd.f32 %v176, %v226
    %v237 = vadd.f32 %v177, %v227
    %v238 = vadd.f32 %v178, %v228
    %v239 = vadd.f32 %v179, %v229
    %v240 = vadd.f32 %v180, %v230
    %241 = vset.pattern.permute.xlu0 3
    %242 = vperm.xlu0 %241, %v51
    %v243 = vpop.permute.xlu0 %242
    %244 = vset.pattern.permute.xlu0 3
    %245 = vperm.xlu0 %244, %v52
    %v246 = vpop.permute.xlu0 %245
    %247 = vset.pattern.permute.xlu0 3
    %248 = vperm.xlu0 %247, %v53
    %v249 = vpop.permute.xlu0 %248
    %250 = vset.pattern.permute.xlu0 3
    %251 = vperm.xlu0 %250, %v54
    %v252 = vpop.permute.xlu0 %251
    %253 = vset.pattern.permute.xlu0 3
    %254 = vperm.xlu0 %253, %v55
    %v255 = vpop.permute.xlu0 %254
    %256 = vset.pattern.permute.xlu0 3
    %257 = vperm.xlu0 %256, %v56
    %v258 = vpop.permute.xlu0 %257
    %259 = vset.pattern.permute.xlu0 3
    %260 = vperm.xlu0 %259, %v57
    %v261 = vpop.permute.xlu0 %260
    %262 = vset.pattern.permute.xlu0 3
    %263 = vperm.xlu0 %262, %v58
    %v264 = vpop.permute.xlu0 %263
    %265 = vset.pattern.permute.xlu0 3
    %266 = vperm.xlu0 %265, %v59
    %v267 = vpop.permute.xlu0 %266
    %268 = vset.pattern.permute.xlu0 3
    %269 = vperm.xlu0 %268, %v60
    %v270 = vpop.permute.xlu0 %269
    %vm271 = vcmp.eq.s32.totalorder %v50, %v243
    %vm272 = vcmp.eq.s32.totalorder %v50, %v246
    %vm273 = vcmp.eq.s32.totalorder %v50, %v249
    %vm274 = vcmp.eq.s32.totalorder %v50, %v252
    %vm275 = vcmp.eq.s32.totalorder %v50, %v255
    %vm276 = vcmp.eq.s32.totalorder %v50, %v258
    %vm277 = vcmp.eq.s32.totalorder %v50, %v261
    %vm278 = vcmp.eq.s32.totalorder %v50, %v264
    %vm279 = vcmp.eq.s32.totalorder %v50, %v267
    %vm280 = vcmp.eq.s32.totalorder %v50, %v270
    %v281 = vsel %vm271, 0.25, 0.0
    %v282 = vsel %vm272, 0.25, 0.0
    %v283 = vsel %vm273, 0.25, 0.0
    %v284 = vsel %vm274, 0.25, 0.0
    %v285 = vsel %vm275, 0.25, 0.0
    %v286 = vsel %vm276, 0.25, 0.0
    %v287 = vsel %vm277, 0.25, 0.0
    %v288 = vsel %vm278, 0.25, 0.0
    %v289 = vsel %vm279, 0.25, 0.0
    %v290 = vsel %vm280, 0.25, 0.0
    %v291 = vadd.f32 %v231, %v281
    %v292 = vadd.f32 %v232, %v282
    %v293 = vadd.f32 %v233, %v283
    %v294 = vadd.f32 %v234, %v284
    %v295 = vadd.f32 %v235, %v285
    %v296 = vadd.f32 %v236, %v286
    %v297 = vadd.f32 %v237, %v287
    %v298 = vadd.f32 %v238, %v288
    %v299 = vadd.f32 %v239, %v289
    %v300 = vadd.f32 %v240, %v290
    %v301 = vld [vmem:[%s1] sm:$0xff]
    %v302 = vld [vmem:[%s1 + $0x8] sm:$0xff]
    %v303 = vld [vmem:[%s1 + $0x10] sm:$0xff]
    %v304 = vld [vmem:[%s1 + $0x18] sm:$0xff]
    %v305 = vld [vmem:[%s1 + $0x20] sm:$0xff]
    %v306 = vld [vmem:[%s1 + $0x28] sm:$0xff]
    %v307 = vld [vmem:[%s1 + $0x30] sm:$0xff]
    %v308 = vld [vmem:[%s1 + $0x38] sm:$0xff]
    %v309 = vld [vmem:[%s1 + $0x40] sm:$0xff]
    %v310 = vld [vmem:[%s1 + $0x48] sm:$0xff]
    %v311 = vld [vmem:[%s1 + $0x50] sm:$0xff]
    %v312 = vld [vmem:[%s1 + $0x58] sm:$0xff]
    %v313 = vld [vmem:[%s1 + $0x60] sm:$0xff]
    %v314 = vld [vmem:[%s1 + $0x68] sm:$0xff]
    %v315 = vld [vmem:[%s1 + $0x70] sm:$0xff]
    %v316 = vld [vmem:[%s1 + $0x78] sm:$0xff]
    %317 = vmatpush.msra.mxu0 %v316
    %318 = vmatpush.msra.mxu0 %v315
    %319 = vmatpush.msra.mxu0 %v314
    %320 = vmatpush.msra.mxu0 %v313
    %321 = vmatpush.msra.mxu0 %v312
    %322 = vmatpush.msra.mxu0 %v311
    %323 = vmatpush.msra.mxu0 %v310
    %324 = vmatpush.msra.mxu0 %v309
    %325 = vmatpush.msra.mxu0 %v308
    %326 = vmatpush.msra.mxu0 %v307
    %327 = vmatpush.msra.mxu0 %v306
    %328 = vmatpush.msra.mxu0 %v305
    %329 = vmatpush.msra.mxu0 %v304
    %330 = vmatpush.msra.mxu0 %v303
    %331 = vmatpush.msra.mxu0 %v302
    %332 = vmatpush.msra.mxu0 %v301
    %333 = vmatmul.f32.gmra.mxu0 %v291
    %v334 = vpop.f32.mrf.mxu0
    %v335 = vadd.f32 0.0, %v334
    %336 = vmatmul.f32.gmra.mxu0 %v292
    %v337 = vpop.f32.mrf.mxu0
    %v338 = vadd.f32 0.0, %v337
    %339 = vmatmul.f32.gmra.mxu0 %v293
    %v340 = vpop.f32.mrf.mxu0
    %v341 = vadd.f32 0.0, %v340
    %342 = vmatmul.f32.gmra.mxu0 %v294
    %v343 = vpop.f32.mrf.mxu0
    %v344 = vadd.f32 0.0, %v343
    %345 = vmatmul.f32.gmra.mxu0 %v295
    %v346 = vpop.f32.mrf.mxu0
    %v347 = vadd.f32 0.0, %v346
    %348 = vmatmul.f32.gmra.mxu0 %v296
    %v349 = vpop.f32.mrf.mxu0
    %v350 = vadd.f32 0.0, %v349
    %351 = vmatmul.f32.gmra.mxu0 %v297
    %v352 = vpop.f32.mrf.mxu0
    %v353 = vadd.f32 0.0, %v352
    %354 = vmatmul.f32.gmra.mxu0 %v298
    %v355 = vpop.f32.mrf.mxu0
    %v356 = vadd.f32 0.0, %v355
    %357 = vmatmul.f32.gmra.mxu0 %v299
    %v358 = vpop.f32.mrf.mxu0
    %v359 = vadd.f32 0.0, %v358
    %360 = vmatmul.f32.gmra.mxu0 %v300
    %v361 = vpop.f32.mrf.mxu0
    %v362 = vadd.f32 0.0, %v361
    %363 = vdwg.mxu0
    %v364 = vld [vmem:[%s2] sm:$0xff]
    %v365 = vld [vmem:[%s2 + $0x8] sm:$0xff]
    %v366 = vld [vmem:[%s2 + $0x10] sm:$0xff]
    %v367 = vld [vmem:[%s2 + $0x18] sm:$0xff]
    %v368 = vld [vmem:[%s2 + $0x20] sm:$0xff]
    %v369 = vld [vmem:[%s2 + $0x28] sm:$0xff]
    %v370 = vld [vmem:[%s2 + $0x30] sm:$0xff]
    %v371 = vld [vmem:[%s2 + $0x38] sm:$0xff]
    %v372 = vld [vmem:[%s2 + $0x40] sm:$0xff]
    %v373 = vld [vmem:[%s2 + $0x48] sm:$0xff]
    %v374 = vld [vmem:[%s2 + $0x50] sm:$0xff]
    %v375 = vld [vmem:[%s2 + $0x58] sm:$0xff]
    %vm376 = vcmask 261120
    %v378 = vsel %vm376, %v335, 0
    %v381 = vsel %vm376, %v338, 0
    %v384 = vsel %vm376, %v341, 0
    %v387 = vsel %vm376, %v344, 0
    %v390 = vsel %vm376, %v347, 0
    %v393 = vsel %vm376, %v350, 0
    %v396 = vsel %vm376, %v353, 0
    %v399 = vsel %vm376, %v356, 0
    %401 = vmatpush.msra.mxu0 0.0
    %402 = vmatpush.msra.mxu0 0.0
    %403 = vmatpush.msra.mxu0 0.0
    %404 = vmatpush.msra.mxu0 0.0
    %405 = vmatpush.msra.mxu0 0.0
    %406 = vmatpush.msra.mxu0 0.0
    %407 = vmatpush.msra.mxu0 0.0
    %408 = vmatpush.msra.mxu0 0.0
    %409 = vmatpush.msra.mxu0 0.0
    %410 = vmatpush.msra.mxu0 0.0
    %411 = vmatpush.msra.mxu0 0.0
    %412 = vmatpush.msra.mxu0 0.0
    %413 = vmatpush.msra.mxu0 %v373
    %414 = vmatpush.msra.mxu0 %v370
    %415 = vmatpush.msra.mxu0 %v367
    %416 = vmatpush.msra.mxu0 %v364
    %417 = vmatmul.f32.gmra.mxu0 %v378
    %v418 = vpop.f32.mrf.mxu0
    %v419 = vadd.f32 0.0, %v418
    %420 = vmatmul.f32.gmra.mxu0 %v381
    %v421 = vpop.f32.mrf.mxu0
    %v422 = vadd.f32 0.0, %v421
    %423 = vmatmul.f32.gmra.mxu0 %v384
    %v424 = vpop.f32.mrf.mxu0
    %v425 = vadd.f32 0.0, %v424
    %426 = vmatmul.f32.gmra.mxu0 %v387
    %v427 = vpop.f32.mrf.mxu0
    %v428 = vadd.f32 0.0, %v427
    %429 = vmatmul.f32.gmra.mxu0 %v390
    %v430 = vpop.f32.mrf.mxu0
    %v431 = vadd.f32 0.0, %v430
    %432 = vmatmul.f32.gmra.mxu0 %v393
    %v433 = vpop.f32.mrf.mxu0
    %v434 = vadd.f32 0.0, %v433
    %435 = vmatmul.f32.gmra.mxu0 %v396
    %v436 = vpop.f32.mrf.mxu0
    %v437 = vadd.f32 0.0, %v436
    %438 = vmatmul.f32.gmra.mxu0 %v399
    %v439 = vpop.f32.mrf.mxu0
    %v440 = vadd.f32 0.0, %v439
    %441 = vdwg.mxu0
    %442 = vmatpush.msra.mxu0 0.0
    %443 = vmatpush.msra.mxu0 0.0
    %444 = vmatpush.msra.mxu0 0.0
    %445 = vmatpush.msra.mxu0 0.0
    %446 = vmatpush.msra.mxu0 0.0
    %447 = vmatpush.msra.mxu0 0.0
    %448 = vmatpush.msra.mxu0 0.0
    %449 = vmatpush.msra.mxu0 0.0
    %450 = vmatpush.msra.mxu0 0.0
    %451 = vmatpush.msra.mxu0 0.0
    %452 = vmatpush.msra.mxu0 0.0
    %453 = vmatpush.msra.mxu0 0.0
    %454 = vmatpush.msra.mxu0 %v374
    %455 = vmatpush.msra.mxu0 %v371
    %456 = vmatpush.msra.mxu0 %v368
    %457 = vmatpush.msra.mxu0 %v365
    %458 = vmatmul.f32.gmra.mxu0 %v378
    %v459 = vpop.f32.mrf.mxu0
    %v460 = vadd.f32 0.0, %v459
    %461 = vmatmul.f32.gmra.mxu0 %v381
    %v462 = vpop.f32.mrf.mxu0
    %v463 = vadd.f32 0.0, %v462
    %464 = vmatmul.f32.gmra.mxu0 %v384
    %v465 = vpop.f32.mrf.mxu0
    %v466 = vadd.f32 0.0, %v465
    %467 = vmatmul.f32.gmra.mxu0 %v387
    %v468 = vpop.f32.mrf.mxu0
    %v469 = vadd.f32 0.0, %v468
    %470 = vmatmul.f32.gmra.mxu0 %v390
    %v471 = vpop.f32.mrf.mxu0
    %v472 = vadd.f32 0.0, %v471
    %473 = vmatmul.f32.gmra.mxu0 %v393
    %v474 = vpop.f32.mrf.mxu0
    %v475 = vadd.f32 0.0, %v474
    %476 = vmatmul.f32.gmra.mxu0 %v396
    %v477 = vpop.f32.mrf.mxu0
    %v478 = vadd.f32 0.0, %v477
    %479 = vmatmul.f32.gmra.mxu0 %v399
    %v480 = vpop.f32.mrf.mxu0
    %v481 = vadd.f32 0.0, %v480
    %482 = vdwg.mxu0
    %483 = vmatpush.msra.mxu0 0.0
    %484 = vmatpush.msra.mxu0 0.0
    %485 = vmatpush.msra.mxu0 0.0
    %486 = vmatpush.msra.mxu0 0.0
    %487 = vmatpush.msra.mxu0 0.0
    %488 = vmatpush.msra.mxu0 0.0
    %489 = vmatpush.msra.mxu0 0.0
    %490 = vmatpush.msra.mxu0 0.0
    %491 = vmatpush.msra.mxu0 0.0
    %492 = vmatpush.msra.mxu0 0.0
    %493 = vmatpush.msra.mxu0 0.0
    %494 = vmatpush.msra.mxu0 0.0
    %495 = vmatpush.msra.mxu0 %v375
    %496 = vmatpush.msra.mxu0 %v372
    %497 = vmatpush.msra.mxu0 %v369
    %498 = vmatpush.msra.mxu0 %v366
    %499 = vmatmul.f32.gmra.mxu0 %v378
    %v500 = vpop.f32.mrf.mxu0
    %v501 = vadd.f32 0.0, %v500
    %502 = vmatmul.f32.gmra.mxu0 %v381
    %v503 = vpop.f32.mrf.mxu0
    %v504 = vadd.f32 0.0, %v503
    %505 = vmatmul.f32.gmra.mxu0 %v384
    %v506 = vpop.f32.mrf.mxu0
    %v507 = vadd.f32 0.0, %v506
    %508 = vmatmul.f32.gmra.mxu0 %v387
    %v509 = vpop.f32.mrf.mxu0
    %v510 = vadd.f32 0.0, %v509
    %511 = vmatmul.f32.gmra.mxu0 %v390
    %v512 = vpop.f32.mrf.mxu0
    %v513 = vadd.f32 0.0, %v512
    %514 = vmatmul.f32.gmra.mxu0 %v393
    %v515 = vpop.f32.mrf.mxu0
    %v516 = vadd.f32 0.0, %v515
    %517 = vmatmul.f32.gmra.mxu0 %v396
    %v518 = vpop.f32.mrf.mxu0
    %v519 = vadd.f32 0.0, %v518
    %520 = vmatmul.f32.gmra.mxu0 %v399
    %v521 = vpop.f32.mrf.mxu0
    %v522 = vadd.f32 0.0, %v521
    %523 = vdwg.mxu0
    %524 = vst [vmem:[#allocation2] sm:$0xff] %v419
    %525 = vst [vmem:[#allocation2 + $0x8] sm:$0xff] %v460
    %526 = vst [vmem:[#allocation2 + $0x10] sm:$0xff] %v501
    %527 = vst [vmem:[#allocation2 + $0x18] sm:$0xff] %v422
    %528 = vst [vmem:[#allocation2 + $0x20] sm:$0xff] %v463
    %529 = vst [vmem:[#allocation2 + $0x28] sm:$0xff] %v504
    %530 = vst [vmem:[#allocation2 + $0x30] sm:$0xff] %v425
    %531 = vst [vmem:[#allocation2 + $0x38] sm:$0xff] %v466
    %532 = vst [vmem:[#allocation2 + $0x40] sm:$0xff] %v507
    %533 = vst [vmem:[#allocation2 + $0x48] sm:$0xff] %v428
    %534 = vst [vmem:[#allocation2 + $0x50] sm:$0xff] %v469
    %535 = vst [vmem:[#allocation2 + $0x58] sm:$0xff] %v510
    %536 = vst [vmem:[#allocation2 + $0x60] sm:$0xff] %v431
    %537 = vst [vmem:[#allocation2 + $0x68] sm:$0xff] %v472
    %538 = vst [vmem:[#allocation2 + $0x70] sm:$0xff] %v513
    %539 = vst [vmem:[#allocation2 + $0x78] sm:$0xff] %v434
    %540 = vst [vmem:[#allocation2 + $0x80] sm:$0xff] %v475
    %541 = vst [vmem:[#allocation2 + $0x88] sm:$0xff] %v516
    %542 = vst [vmem:[#allocation2 + $0x90] sm:$0xff] %v437
    %543 = vst [vmem:[#allocation2 + $0x98] sm:$0xff] %v478
    %544 = vst [vmem:[#allocation2 + $0xa0] sm:$0xff] %v519
    %545 = vst [vmem:[#allocation2 + $0xa8] sm:$0xff] %v440
    %546 = vst [vmem:[#allocation2 + $0xb0] sm:$0xff] %v481
    %547 = vst [vmem:[#allocation2 + $0xb8] sm:$0xff] %v522
    %v548 = vld [vmem:[#allocation3] sm:$0xff]
    %v549 = vld [vmem:[#allocation3 + $0x8] sm:$0xff]
    %v550 = vld [vmem:[#allocation3 + $0x10] sm:$0xff]
    %v551 = vld [vmem:[#allocation3 + $0x18] sm:$0xff]
    %v552 = vld [vmem:[#allocation3 + $0x20] sm:$0xff]
    %v553 = vld [vmem:[#allocation3 + $0x28] sm:$0xff]
    %v554 = vld [vmem:[#allocation3 + $0x30] sm:$0xff]
    %v555 = vld [vmem:[#allocation3 + $0x38] sm:$0xff]
    %v556 = vld [vmem:[#allocation3 + $0x40] sm:$0xff]
    %v557 = vld [vmem:[#allocation3 + $0x48] sm:$0xff]
    %v558 = vld [vmem:[#allocation3 + $0x50] sm:$0xff]
    %v559 = vld [vmem:[#allocation3 + $0x58] sm:$0xff]
    %v560 = vld [vmem:[#allocation3 + $0x60] sm:$0xff]
    %v561 = vld [vmem:[#allocation3 + $0x68] sm:$0xff]
    %v562 = vld [vmem:[#allocation3 + $0x70] sm:$0xff]
    %v563 = vld [vmem:[#allocation3 + $0x78] sm:$0xff]
    %v564 = vld [vmem:[#allocation3 + $0x80] sm:$0xff]
    %v565 = vld [vmem:[#allocation3 + $0x88] sm:$0xff]
    %v566 = vld [vmem:[#allocation3 + $0x90] sm:$0xff]
    %v567 = vld [vmem:[#allocation3 + $0x98] sm:$0xff]
    %v568 = vld [vmem:[#allocation3 + $0xa0] sm:$0xff]
    %v569 = vld [vmem:[#allocation3 + $0xa8] sm:$0xff]
    %v570 = vld [vmem:[#allocation3 + $0xb0] sm:$0xff]
    %v571 = vld [vmem:[#allocation3 + $0xb8] sm:$0xff]
    %v572 = vld [vmem:[#allocation3 + $0xc0] sm:$0xff]
    %v573 = vld [vmem:[#allocation3 + $0xc8] sm:$0xff]
    %v574 = vld [vmem:[#allocation3 + $0xd0] sm:$0xff]
    %v575 = vld [vmem:[#allocation3 + $0xd8] sm:$0xff]
    %v576 = vld [vmem:[#allocation3 + $0xe0] sm:$0xff]
    %v577 = vld [vmem:[#allocation3 + $0xe8] sm:$0xff]
    %v578 = vld [vmem:[#allocation3 + $0xf0] sm:$0xff]
    %v579 = vld [vmem:[#allocation3 + $0xf8] sm:$0xff]
    %v580 = vld [vmem:[#allocation3 + $0x100] sm:$0xff]
    %v581 = vld [vmem:[#allocation3 + $0x108] sm:$0xff]
    %v582 = vld [vmem:[#allocation3 + $0x110] sm:$0xff]
    %v583 = vld [vmem:[#allocation3 + $0x118] sm:$0xff]
    %v584 = vld [vmem:[#allocation3 + $0x120] sm:$0xff]
    %v585 = vld [vmem:[#allocation3 + $0x128] sm:$0xff]
    %v586 = vld [vmem:[#allocation3 + $0x130] sm:$0xff]
    %v587 = vld [vmem:[#allocation3 + $0x138] sm:$0xff]
    %v588 = vld [vmem:[#allocation3 + $0x140] sm:$0xff]
    %v589 = vld [vmem:[#allocation3 + $0x148] sm:$0xff]
    %v590 = vld [vmem:[#allocation3 + $0x150] sm:$0xff]
    %v591 = vld [vmem:[#allocation3 + $0x158] sm:$0xff]
    %v592 = vld [vmem:[#allocation3 + $0x160] sm:$0xff]
    %v593 = vld [vmem:[#allocation3 + $0x168] sm:$0xff]
    %v594 = vld [vmem:[#allocation3 + $0x170] sm:$0xff]
    %v595 = vld [vmem:[#allocation3 + $0x178] sm:$0xff]
    %v596 = vld [vmem:[%s6] sm:$0xff]
    %v597 = vld [vmem:[#allocation2] sm:$0xff]
    %v598 = vld [vmem:[#allocation2 + $0x8] sm:$0xff]
    %v599 = vld [vmem:[#allocation2 + $0x10] sm:$0xff]
    %600 = vmatpush.msra.mxu0 %v593
    %601 = vmatpush.msra.mxu0 %v590
    %602 = vmatpush.msra.mxu0 %v587
    %603 = vmatpush.msra.mxu0 %v584
    %604 = vmatpush.msra.mxu0 %v581
    %605 = vmatpush.msra.mxu0 %v578
    %606 = vmatpush.msra.mxu0 %v575
    %607 = vmatpush.msra.mxu0 %v572
    %608 = vmatpush.msra.mxu0 %v569
    %609 = vmatpush.msra.mxu0 %v566
    %610 = vmatpush.msra.mxu0 %v563
    %611 = vmatpush.msra.mxu0 %v560
    %612 = vmatpush.msra.mxu0 %v557
    %613 = vmatpush.msra.mxu0 %v554
    %614 = vmatpush.msra.mxu0 %v551
    %615 = vmatpush.msra.mxu0 %v548
    %616 = vmatmul.f32.gmra.mxu0 0.0
    %v617 = vpop.f32.mrf.mxu0
    %v618 = vadd.f32 0.0, %v617
    %619 = vdwg.mxu0
    %620 = vmatpush.msra.mxu0 %v594
    %621 = vmatpush.msra.mxu0 %v591
    %622 = vmatpush.msra.mxu0 %v588
    %623 = vmatpush.msra.mxu0 %v585
    %624 = vmatpush.msra.mxu0 %v582
    %625 = vmatpush.msra.mxu0 %v579
    %626 = vmatpush.msra.mxu0 %v576
    %627 = vmatpush.msra.mxu0 %v573
    %628 = vmatpush.msra.mxu0 %v570
    %629 = vmatpush.msra.mxu0 %v567
    %630 = vmatpush.msra.mxu0 %v564
    %631 = vmatpush.msra.mxu0 %v561
    %632 = vmatpush.msra.mxu0 %v558
    %633 = vmatpush.msra.mxu0 %v555
    %634 = vmatpush.msra.mxu0 %v552
    %635 = vmatpush.msra.mxu0 %v549
    %636 = vmatmul.f32.gmra.mxu0 0.0
    %v637 = vpop.f32.mrf.mxu0
    %v638 = vadd.f32 0.0, %v637
    %639 = vdwg.mxu0
    %640 = vmatpush.msra.mxu0 %v595
    %641 = vmatpush.msra.mxu0 %v592
    %642 = vmatpush.msra.mxu0 %v589
    %643 = vmatpush.msra.mxu0 %v586
    %644 = vmatpush.msra.mxu0 %v583
    %645 = vmatpush.msra.mxu0 %v580
    %646 = vmatpush.msra.mxu0 %v577
    %647 = vmatpush.msra.mxu0 %v574
    %648 = vmatpush.msra.mxu0 %v571
    %649 = vmatpush.msra.mxu0 %v568
    %650 = vmatpush.msra.mxu0 %v565
    %651 = vmatpush.msra.mxu0 %v562
    %652 = vmatpush.msra.mxu0 %v559
    %653 = vmatpush.msra.mxu0 %v556
    %654 = vmatpush.msra.mxu0 %v553
    %655 = vmatpush.msra.mxu0 %v550
    %656 = vmatmul.f32.gmra.mxu0 0.0
    %v657 = vpop.f32.mrf.mxu0
    %v658 = vadd.f32 0.0, %v657
    %659 = vdwg.mxu0
    %v660 = vadd.f32 %v597, %v618
    %v661 = vsub.f32 0.0, %v660
    %v662 = vmul.f32 %v661, 1.442695
    %v663 = vpow.pop %v662
    %v664 = vadd.f32 %v663, 1.0
    %v665 = vrcp.pop %v664
    %v666 = vmul.f32 %v664, %v665
    %v667 = vsub.f32 1.0, %v666
    %v668 = vmul.f32 %v665, %v667
    %v669 = vadd.f32 %v665, %v668
    %vm670 = vweird.f32 %v664
    %vm671 = vweird.f32 %v665
    %vm672 = vmor %vm670, %vm671
    %v673 = vsel %vm672, %v665, %v669
    %v674 = vand.u32 2147483647, %v664
    %vm675 = vcmp.eq.f32.partialorder %v674, 8.507059e+37
    %v676 = vand.u32 %v664, 2147483648
    %v677 = vor.u32 1.1754944e-38, %v676
    %v678 = vsel %vm675, %v677, %v673
    %v679 = vmul.f32 1.0, %v678
    %v680 = vadd.f32 %v598, %v638
    %v681 = vsub.f32 0.0, %v680
    %v682 = vmul.f32 %v681, 1.442695
    %v683 = vpow.pop %v682
    %v684 = vadd.f32 %v683, 1.0
    %v685 = vrcp.pop %v684
    %v686 = vmul.f32 %v684, %v685
    %v687 = vsub.f32 1.0, %v686
    %v688 = vmul.f32 %v685, %v687
    %v689 = vadd.f32 %v685, %v688
    %vm690 = vweird.f32 %v684
    %vm691 = vweird.f32 %v685
    %vm692 = vmor %vm690, %vm691
    %v693 = vsel %vm692, %v685, %v689
    %v694 = vand.u32 2147483647, %v684
    %vm695 = vcmp.eq.f32.partialorder %v694, 8.507059e+37
    %v696 = vand.u32 %v684, 2147483648
    %v697 = vor.u32 1.1754944e-38, %v696
    %v698 = vsel %vm695, %v697, %v693
    %v699 = vmul.f32 1.0, %v698
    %v700 = vmul.f32 %v679, %v658
    %v701 = vadd.f32 %v599, %v700
    %v702 = vtanh.pop %v701
    %v703 = vsub.f32 1.0, %v699
    %v704 = vmul.f32 %v703, %v702
    %v705 = vmul.f32 %v699, 0.0
    %v706 = vadd.f32 %v704, %v705
    %vm707 = vcmp.eq.s32.totalorder %v596, 0
    %v708 = vsel %vm707, 1, 0
    %709 = vset.pattern.permute.xlu0 0
    %710 = vperm.xlu0 %709, %v708
    %v711 = vpop.permute.xlu0 %710
    %vm712 = vcmp.eq.s32.totalorder %v711, 1
    %v713 = vsel %vm712, %v706, 0.0
    %v714 = vld [vmem:[#allocation2 + $0x18] sm:$0xff]
    %v715 = vld [vmem:[#allocation2 + $0x20] sm:$0xff]
    %v716 = vld [vmem:[#allocation2 + $0x28] sm:$0xff]
    %717 = vmatpush.msra.mxu0 %v593
    %718 = vmatpush.msra.mxu0 %v590
    %719 = vmatpush.msra.mxu0 %v587
    %720 = vmatpush.msra.mxu0 %v584
    %721 = vmatpush.msra.mxu0 %v581
    %722 = vmatpush.msra.mxu0 %v578
    %723 = vmatpush.msra.mxu0 %v575
    %724 = vmatpush.msra.mxu0 %v572
    %725 = vmatpush.msra.mxu0 %v569
    %726 = vmatpush.msra.mxu0 %v566
    %727 = vmatpush.msra.mxu0 %v563
    %728 = vmatpush.msra.mxu0 %v560
    %729 = vmatpush.msra.mxu0 %v557
    %730 = vmatpush.msra.mxu0 %v554
    %731 = vmatpush.msra.mxu0 %v551
    %732 = vmatpush.msra.mxu0 %v548
    %733 = vmatmul.f32.gmra.mxu0 %v706
    %v734 = vpop.f32.mrf.mxu0
    %v735 = vadd.f32 0.0, %v734
    %736 = vdwg.mxu0
    %737 = vmatpush.msra.mxu0 %v594
    %738 = vmatpush.msra.mxu0 %v591
    %739 = vmatpush.msra.mxu0 %v588
    %740 = vmatpush.msra.mxu0 %v585
    %741 = vmatpush.msra.mxu0 %v582
    %742 = vmatpush.msra.mxu0 %v579
    %743 = vmatpush.msra.mxu0 %v576
    %744 = vmatpush.msra.mxu0 %v573
    %745 = vmatpush.msra.mxu0 %v570
    %746 = vmatpush.msra.mxu0 %v567
    %747 = vmatpush.msra.mxu0 %v564
    %748 = vmatpush.msra.mxu0 %v561
    %749 = vmatpush.msra.mxu0 %v558
    %750 = vmatpush.msra.mxu0 %v555
    %751 = vmatpush.msra.mxu0 %v552
    %752 = vmatpush.msra.mxu0 %v549
    %753 = vmatmul.f32.gmra.mxu0 %v706
    %v754 = vpop.f32.mrf.mxu0
    %v755 = vadd.f32 0.0, %v754
    %756 = vdwg.mxu0
    %757 = vmatpush.msra.mxu0 %v595
    %758 = vmatpush.msra.mxu0 %v592
    %759 = vmatpush.msra.mxu0 %v589
    %760 = vmatpush.msra.mxu0 %v586
    %761 = vmatpush.msra.mxu0 %v583
    %762 = vmatpush.msra.mxu0 %v580
    %763 = vmatpush.msra.mxu0 %v577
    %764 = vmatpush.msra.mxu0 %v574
    %765 = vmatpush.msra.mxu0 %v571
    %766 = vmatpush.msra.mxu0 %v568
    %767 = vmatpush.msra.mxu0 %v565
    %768 = vmatpush.msra.mxu0 %v562
    %769 = vmatpush.msra.mxu0 %v559
    %770 = vmatpush.msra.mxu0 %v556
    %771 = vmatpush.msra.mxu0 %v553
    %772 = vmatpush.msra.mxu0 %v550
    %773 = vmatmul.f32.gmra.mxu0 %v706
    %v774 = vpop.f32.mrf.mxu0
    %v775 = vadd.f32 0.0, %v774
    %776 = vdwg.mxu0
    %v777 = vadd.f32 %v714, %v735
    %v778 = vsub.f32 0.0, %v777
    %v779 = vmul.f32 %v778, 1.442695
    %v780 = vpow.pop %v779
    %v781 = vadd.f32 %v780, 1.0
    %v782 = vrcp.pop %v781
    %v783 = vmul.f32 %v781, %v782
    %v784 = vsub.f32 1.0, %v783
    %v785 = vmul.f32 %v782, %v784
    %v786 = vadd.f32 %v782, %v785
    %vm787 = vweird.f32 %v781
    %vm788 = vweird.f32 %v782
    %vm789 = vmor %vm787, %vm788
    %v790 = vsel %vm789, %v782, %v786
    %v791 = vand.u32 2147483647, %v781
    %vm792 = vcmp.eq.f32.partialorder %v791, 8.507059e+37
    %v793 = vand.u32 %v781, 2147483648
    %v794 = vor.u32 1.1754944e-38, %v793
    %v795 = vsel %vm792, %v794, %v790
    %v796 = vmul.f32 1.0, %v795
    %v797 = vadd.f32 %v715, %v755
    %v798 = vsub.f32 0.0, %v797
    %v799 = vmul.f32 %v798, 1.442695
    %v800 = vpow.pop %v799
    %v801 = vadd.f32 %v800, 1.0
    %v802 = vrcp.pop %v801
    %v803 = vmul.f32 %v801, %v802
    %v804 = vsub.f32 1.0, %v803
    %v805 = vmul.f32 %v802, %v804
    %v806 = vadd.f32 %v802, %v805
    %vm807 = vweird.f32 %v801
    %vm808 = vweird.f32 %v802
    %vm809 = vmor %vm807, %vm808
    %v810 = vsel %vm809, %v802, %v806
    %v811 = vand.u32 2147483647, %v801
    %vm812 = vcmp.eq.f32.partialorder %v811, 8.507059e+37
    %v813 = vand.u32 %v801, 2147483648
    %v814 = vor.u32 1.1754944e-38, %v813
    %v815 = vsel %vm812, %v814, %v810
    %v816 = vmul.f32 1.0, %v815
    %v817 = vmul.f32 %v796, %v775
    %v818 = vadd.f32 %v716, %v817
    %v819 = vtanh.pop %v818
    %v820 = vsub.f32 1.0, %v816
    %v821 = vmul.f32 %v820, %v819
    %v822 = vmul.f32 %v816, %v706
    %v823 = vadd.f32 %v821, %v822
    %vm824 = vcmp.eq.s32.totalorder %v596, 1
    %v825 = vsel %vm824, 1, 0
    %826 = vset.pattern.permute.xlu0 0
    %827 = vperm.xlu0 %826, %v825
    %v828 = vpop.permute.xlu0 %827
    %vm829 = vcmp.eq.s32.totalorder %v828, 1
    %v830 = vsel %vm829, %v823, %v713
    %v831 = vld [vmem:[#allocation2 + $0x30] sm:$0xff]
    %v832 = vld [vmem:[#allocation2 + $0x38] sm:$0xff]
    %v833 = vld [vmem:[#allocation2 + $0x40] sm:$0xff]
    %834 = vmatpush.msra.mxu0 %v593
    %835 = vmatpush.msra.mxu0 %v590
    %836 = vmatpush.msra.mxu0 %v587
    %837 = vmatpush.msra.mxu0 %v584
    %838 = vmatpush.msra.mxu0 %v581
    %839 = vmatpush.msra.mxu0 %v578
    %840 = vmatpush.msra.mxu0 %v575
    %841 = vmatpush.msra.mxu0 %v572
    %842 = vmatpush.msra.mxu0 %v569
    %843 = vmatpush.msra.mxu0 %v566
    %844 = vmatpush.msra.mxu0 %v563
    %845 = vmatpush.msra.mxu0 %v560
    %846 = vmatpush.msra.mxu0 %v557
    %847 = vmatpush.msra.mxu0 %v554
    %848 = vmatpush.msra.mxu0 %v551
    %849 = vmatpush.msra.mxu0 %v548
    %850 = vmatmul.f32.gmra.mxu0 %v823
    %v851 = vpop.f32.mrf.mxu0
    %v852 = vadd.f32 0.0, %v851
    %853 = vdwg.mxu0
    %854 = vmatpush.msra.mxu0 %v594
    %855 = vmatpush.msra.mxu0 %v591
    %856 = vmatpush.msra.mxu0 %v588
    %857 = vmatpush.msra.mxu0 %v585
    %858 = vmatpush.msra.mxu0 %v582
    %859 = vmatpush.msra.mxu0 %v579
    %860 = vmatpush.msra.mxu0 %v576
    %861 = vmatpush.msra.mxu0 %v573
    %862 = vmatpush.msra.mxu0 %v570
    %863 = vmatpush.msra.mxu0 %v567
    %864 = vmatpush.msra.mxu0 %v564
    %865 = vmatpush.msra.mxu0 %v561
    %866 = vmatpush.msra.mxu0 %v558
    %867 = vmatpush.msra.mxu0 %v555
    %868 = vmatpush.msra.mxu0 %v552
    %869 = vmatpush.msra.mxu0 %v549
    %870 = vmatmul.f32.gmra.mxu0 %v823
    %v871 = vpop.f32.mrf.mxu0
    %v872 = vadd.f32 0.0, %v871
    %873 = vdwg.mxu0
    %874 = vmatpush.msra.mxu0 %v595
    %875 = vmatpush.msra.mxu0 %v592
    %876 = vmatpush.msra.mxu0 %v589
    %877 = vmatpush.msra.mxu0 %v586
    %878 = vmatpush.msra.mxu0 %v583
    %879 = vmatpush.msra.mxu0 %v580
    %880 = vmatpush.msra.mxu0 %v577
    %881 = vmatpush.msra.mxu0 %v574
    %882 = vmatpush.msra.mxu0 %v571
    %883 = vmatpush.msra.mxu0 %v568
    %884 = vmatpush.msra.mxu0 %v565
    %885 = vmatpush.msra.mxu0 %v562
    %886 = vmatpush.msra.mxu0 %v559
    %887 = vmatpush.msra.mxu0 %v556
    %888 = vmatpush.msra.mxu0 %v553
    %889 = vmatpush.msra.mxu0 %v550
    %890 = vmatmul.f32.gmra.mxu0 %v823
    %v891 = vpop.f32.mrf.mxu0
    %v892 = vadd.f32 0.0, %v891
    %893 = vdwg.mxu0
    %v894 = vadd.f32 %v831, %v852
    %v895 = vsub.f32 0.0, %v894
    %v896 = vmul.f32 %v895, 1.442695
    %v897 = vpow.pop %v896
    %v898 = vadd.f32 %v897, 1.0
    %v899 = vrcp.pop %v898
    %v900 = vmul.f32 %v898, %v899
    %v901 = vsub.f32 1.0, %v900
    %v902 = vmul.f32 %v899, %v901
    %v903 = vadd.f32 %v899, %v902
    %vm904 = vweird.f32 %v898
    %vm905 = vweird.f32 %v899
    %vm906 = vmor %vm904, %vm905
    %v907 = vsel %vm906, %v899, %v903
    %v908 = vand.u32 2147483647, %v898
    %vm909 = vcmp.eq.f32.partialorder %v908, 8.507059e+37
    %v910 = vand.u32 %v898, 2147483648
    %v911 = vor.u32 1.1754944e-38, %v910
    %v912 = vsel %vm909, %v911, %v907
    %v913 = vmul.f32 1.0, %v912
    %v914 = vadd.f32 %v832, %v872
    %v915 = vsub.f32 0.0, %v914
    %v916 = vmul.f32 %v915, 1.442695
    %v917 = vpow.pop %v916
    %v918 = vadd.f32 %v917, 1.0
    %v919 = vrcp.pop %v918
    %v920 = vmul.f32 %v918, %v919
    %v921 = vsub.f32 1.0, %v920
    %v922 = vmul.f32 %v919, %v921
    %v923 = vadd.f32 %v919, %v922
    %vm924 = vweird.f32 %v918
    %vm925 = vweird.f32 %v919
    %vm926 = vmor %vm924, %vm925
    %v927 = vsel %vm926, %v919, %v923
    %v928 = vand.u32 2147483647, %v918
    %vm929 = vcmp.eq.f32.partialorder %v928, 8.507059e+37
    %v930 = vand.u32 %v918, 2147483648
    %v931 = vor.u32 1.1754944e-38, %v930
    %v932 = vsel %vm929, %v931, %v927
    %v933 = vmul.f32 1.0, %v932
    %v934 = vmul.f32 %v913, %v892
    %v935 = vadd.f32 %v833, %v934
    %v936 = vtanh.pop %v935
    %v937 = vsub.f32 1.0, %v933
    %v938 = vmul.f32 %v937, %v936
    %v939 = vmul.f32 %v933, %v823
    %v940 = vadd.f32 %v938, %v939
    %vm941 = vcmp.eq.s32.totalorder %v596, 2
    %v942 = vsel %vm941, 1, 0
    %943 = vset.pattern.permute.xlu0 0
    %944 = vperm.xlu0 %943, %v942
    %v945 = vpop.permute.xlu0 %944
    %vm946 = vcmp.eq.s32.totalorder %v945, 1
    %v947 = vsel %vm946, %v940, %v830
    %v948 = vld [vmem:[#allocation2 + $0x48] sm:$0xff]
    %v949 = vld [vmem:[#allocation2 + $0x50] sm:$0xff]
    %v950 = vld [vmem:[#allocation2 + $0x58] sm:$0xff]
    %951 = vmatpush.msra.mxu0 %v593
    %952 = vmatpush.msra.mxu0 %v590
    %953 = vmatpush.msra.mxu0 %v587
    %954 = vmatpush.msra.mxu0 %v584
    %955 = vmatpush.msra.mxu0 %v581
    %956 = vmatpush.msra.mxu0 %v578
    %957 = vmatpush.msra.mxu0 %v575
    %958 = vmatpush.msra.mxu0 %v572
    %959 = vmatpush.msra.mxu0 %v569
    %960 = vmatpush.msra.mxu0 %v566
    %961 = vmatpush.msra.mxu0 %v563
    %962 = vmatpush.msra.mxu0 %v560
    %963 = vmatpush.msra.mxu0 %v557
    %964 = vmatpush.msra.mxu0 %v554
    %965 = vmatpush.msra.mxu0 %v551
    %966 = vmatpush.msra.mxu0 %v548
    %967 = vmatmul.f32.gmra.mxu0 %v940
    %v968 = vpop.f32.mrf.mxu0
    %v969 = vadd.f32 0.0, %v968
    %970 = vdwg.mxu0
    %971 = vmatpush.msra.mxu0 %v594
    %972 = vmatpush.msra.mxu0 %v591
    %973 = vmatpush.msra.mxu0 %v588
    %974 = vmatpush.msra.mxu0 %v585
    %975 = vmatpush.msra.mxu0 %v582
    %976 = vmatpush.msra.mxu0 %v579
    %977 = vmatpush.msra.mxu0 %v576
    %978 = vmatpush.msra.mxu0 %v573
    %979 = vmatpush.msra.mxu0 %v570
    %980 = vmatpush.msra.mxu0 %v567
    %981 = vmatpush.msra.mxu0 %v564
    %982 = vmatpush.msra.mxu0 %v561
    %983 = vmatpush.msra.mxu0 %v558
    %984 = vmatpush.msra.mxu0 %v555
    %985 = vmatpush.msra.mxu0 %v552
    %986 = vmatpush.msra.mxu0 %v549
    %987 = vmatmul.f32.gmra.mxu0 %v940
    %v988 = vpop.f32.mrf.mxu0
    %v989 = vadd.f32 0.0, %v988
    %990 = vdwg.mxu0
    %991 = vmatpush.msra.mxu0 %v595
    %992 = vmatpush.msra.mxu0 %v592
    %993 = vmatpush.msra.mxu0 %v589
    %994 = vmatpush.msra.mxu0 %v586
    %995 = vmatpush.msra.mxu0 %v583
    %996 = vmatpush.msra.mxu0 %v580
    %997 = vmatpush.msra.mxu0 %v577
    %998 = vmatpush.msra.mxu0 %v574
    %999 = vmatpush.msra.mxu0 %v571
    %1000 = vmatpush.msra.mxu0 %v568
    %1001 = vmatpush.msra.mxu0 %v565
    %1002 = vmatpush.msra.mxu0 %v562
    %1003 = vmatpush.msra.mxu0 %v559
    %1004 = vmatpush.msra.mxu0 %v556
    %1005 = vmatpush.msra.mxu0 %v553
    %1006 = vmatpush.msra.mxu0 %v550
    %1007 = vmatmul.f32.gmra.mxu0 %v940
    %v1008 = vpop.f32.mrf.mxu0
    %v1009 = vadd.f32 0.0, %v1008
    %1010 = vdwg.mxu0
    %v1011 = vadd.f32 %v948, %v969
    %v1012 = vsub.f32 0.0, %v1011
    %v1013 = vmul.f32 %v1012, 1.442695
    %v1014 = vpow.pop %v1013
    %v1015 = vadd.f32 %v1014, 1.0
    %v1016 = vrcp.pop %v1015
    %v1017 = vmul.f32 %v1015, %v1016
    %v1018 = vsub.f32 1.0, %v1017
    %v1019 = vmul.f32 %v1016, %v1018
    %v1020 = vadd.f32 %v1016, %v1019
    %vm1021 = vweird.f32 %v1015
    %vm1022 = vweird.f32 %v1016
    %vm1023 = vmor %vm1021, %vm1022
    %v1024 = vsel %vm1023, %v1016, %v1020
    %v1025 = vand.u32 2147483647, %v1015
    %vm1026 = vcmp.eq.f32.partialorder %v1025, 8.507059e+37
    %v1027 = vand.u32 %v1015, 2147483648
    %v1028 = vor.u32 1.1754944e-38, %v1027
    %v1029 = vsel %vm1026, %v1028, %v1024
    %v1030 = vmul.f32 1.0, %v1029
    %v1031 = vadd.f32 %v949, %v989
    %v1032 = vsub.f32 0.0, %v1031
    %v1033 = vmul.f32 %v1032, 1.442695
    %v1034 = vpow.pop %v1033
    %v1035 = vadd.f32 %v1034, 1.0
    %v1036 = vrcp.pop %v1035
    %v1037 = vmul.f32 %v1035, %v1036
    %v1038 = vsub.f32 1.0, %v1037
    %v1039 = vmul.f32 %v1036, %v1038
    %v1040 = vadd.f32 %v1036, %v1039
    %vm1041 = vweird.f32 %v1035
    %vm1042 = vweird.f32 %v1036
    %vm1043 = vmor %vm1041, %vm1042
    %v1044 = vsel %vm1043, %v1036, %v1040
    %v1045 = vand.u32 2147483647, %v1035
    %vm1046 = vcmp.eq.f32.partialorder %v1045, 8.507059e+37
    %v1047 = vand.u32 %v1035, 2147483648
    %v1048 = vor.u32 1.1754944e-38, %v1047
    %v1049 = vsel %vm1046, %v1048, %v1044
    %v1050 = vmul.f32 1.0, %v1049
    %v1051 = vmul.f32 %v1030, %v1009
    %v1052 = vadd.f32 %v950, %v1051
    %v1053 = vtanh.pop %v1052
    %v1054 = vsub.f32 1.0, %v1050
    %v1055 = vmul.f32 %v1054, %v1053
    %v1056 = vmul.f32 %v1050, %v940
    %v1057 = vadd.f32 %v1055, %v1056
    %vm1058 = vcmp.eq.s32.totalorder %v596, 3
    %v1059 = vsel %vm1058, 1, 0
    %1060 = vset.pattern.permute.xlu0 0
    %1061 = vperm.xlu0 %1060, %v1059
    %v1062 = vpop.permute.xlu0 %1061
    %vm1063 = vcmp.eq.s32.totalorder %v1062, 1
    %v1064 = vsel %vm1063, %v1057, %v947
    %v1065 = vld [vmem:[#allocation2 + $0x60] sm:$0xff]
    %v1066 = vld [vmem:[#allocation2 + $0x68] sm:$0xff]
    %v1067 = vld [vmem:[#allocation2 + $0x70] sm:$0xff]
    %1068 = vmatpush.msra.mxu0 %v593
    %1069 = vmatpush.msra.mxu0 %v590
    %1070 = vmatpush.msra.mxu0 %v587
    %1071 = vmatpush.msra.mxu0 %v584
    %1072 = vmatpush.msra.mxu0 %v581
    %1073 = vmatpush.msra.mxu0 %v578
    %1074 = vmatpush.msra.mxu0 %v575
    %1075 = vmatpush.msra.mxu0 %v572
    %1076 = vmatpush.msra.mxu0 %v569
    %1077 = vmatpush.msra.mxu0 %v566
    %1078 = vmatpush.msra.mxu0 %v563
    %1079 = vmatpush.msra.mxu0 %v560
    %1080 = vmatpush.msra.mxu0 %v557
    %1081 = vmatpush.msra.mxu0 %v554
    %1082 = vmatpush.msra.mxu0 %v551
    %1083 = vmatpush.msra.mxu0 %v548
    %1084 = vmatmul.f32.gmra.mxu0 %v1057
    %v1085 = vpop.f32.mrf.mxu0
    %v1086 = vadd.f32 0.0, %v1085
    %1087 = vdwg.mxu0
    %1088 = vmatpush.msra.mxu0 %v594
    %1089 = vmatpush.msra.mxu0 %v591
    %1090 = vmatpush.msra.mxu0 %v588
    %1091 = vmatpush.msra.mxu0 %v585
    %1092 = vmatpush.msra.mxu0 %v582
    %1093 = vmatpush.msra.mxu0 %v579
    %1094 = vmatpush.msra.mxu0 %v576
    %1095 = vmatpush.msra.mxu0 %v573
    %1096 = vmatpush.msra.mxu0 %v570
    %1097 = vmatpush.msra.mxu0 %v567
    %1098 = vmatpush.msra.mxu0 %v564
    %1099 = vmatpush.msra.mxu0 %v561
    %1100 = vmatpush.msra.mxu0 %v558
    %1101 = vmatpush.msra.mxu0 %v555
    %1102 = vmatpush.msra.mxu0 %v552
    %1103 = vmatpush.msra.mxu0 %v549
    %1104 = vmatmul.f32.gmra.mxu0 %v1057
    %v1105 = vpop.f32.mrf.mxu0
    %v1106 = vadd.f32 0.0, %v1105
    %1107 = vdwg.mxu0
    %1108 = vmatpush.msra.mxu0 %v595
    %1109 = vmatpush.msra.mxu0 %v592
    %1110 = vmatpush.msra.mxu0 %v589
    %1111 = vmatpush.msra.mxu0 %v586
    %1112 = vmatpush.msra.mxu0 %v583
    %1113 = vmatpush.msra.mxu0 %v580
    %1114 = vmatpush.msra.mxu0 %v577
    %1115 = vmatpush.msra.mxu0 %v574
    %1116 = vmatpush.msra.mxu0 %v571
    %1117 = vmatpush.msra.mxu0 %v568
    %1118 = vmatpush.msra.mxu0 %v565
    %1119 = vmatpush.msra.mxu0 %v562
    %1120 = vmatpush.msra.mxu0 %v559
    %1121 = vmatpush.msra.mxu0 %v556
    %1122 = vmatpush.msra.mxu0 %v553
    %1123 = vmatpush.msra.mxu0 %v550
    %1124 = vmatmul.f32.gmra.mxu0 %v1057
    %v1125 = vpop.f32.mrf.mxu0
    %v1126 = vadd.f32 0.0, %v1125
    %1127 = vdwg.mxu0
    %v1128 = vadd.f32 %v1065, %v1086
    %v1129 = vsub.f32 0.0, %v1128
    %v1130 = vmul.f32 %v1129, 1.442695
    %v1131 = vpow.pop %v1130
    %v1132 = vadd.f32 %v1131, 1.0
    %v1133 = vrcp.pop %v1132
    %v1134 = vmul.f32 %v1132, %v1133
    %v1135 = vsub.f32 1.0, %v1134
    %v1136 = vmul.f32 %v1133, %v1135
    %v1137 = vadd.f32 %v1133, %v1136
    %vm1138 = vweird.f32 %v1132
    %vm1139 = vweird.f32 %v1133
    %vm1140 = vmor %vm1138, %vm1139
    %v1141 = vsel %vm1140, %v1133, %v1137
    %v1142 = vand.u32 2147483647, %v1132
    %vm1143 = vcmp.eq.f32.partialorder %v1142, 8.507059e+37
    %v1144 = vand.u32 %v1132, 2147483648
    %v1145 = vor.u32 1.1754944e-38, %v1144
    %v1146 = vsel %vm1143, %v1145, %v1141
    %v1147 = vmul.f32 1.0, %v1146
    %v1148 = vadd.f32 %v1066, %v1106
    %v1149 = vsub.f32 0.0, %v1148
    %v1150 = vmul.f32 %v1149, 1.442695
    %v1151 = vpow.pop %v1150
    %v1152 = vadd.f32 %v1151, 1.0
    %v1153 = vrcp.pop %v1152
    %v1154 = vmul.f32 %v1152, %v1153
    %v1155 = vsub.f32 1.0, %v1154
    %v1156 = vmul.f32 %v1153, %v1155
    %v1157 = vadd.f32 %v1153, %v1156
    %vm1158 = vweird.f32 %v1152
    %vm1159 = vweird.f32 %v1153
    %vm1160 = vmor %vm1158, %vm1159
    %v1161 = vsel %vm1160, %v1153, %v1157
    %v1162 = vand.u32 2147483647, %v1152
    %vm1163 = vcmp.eq.f32.partialorder %v1162, 8.507059e+37
    %v1164 = vand.u32 %v1152, 2147483648
    %v1165 = vor.u32 1.1754944e-38, %v1164
    %v1166 = vsel %vm1163, %v1165, %v1161
    %v1167 = vmul.f32 1.0, %v1166
    %v1168 = vmul.f32 %v1147, %v1126
    %v1169 = vadd.f32 %v1067, %v1168
    %v1170 = vtanh.pop %v1169
    %v1171 = vsub.f32 1.0, %v1167
    %v1172 = vmul.f32 %v1171, %v1170
    %v1173 = vmul.f32 %v1167, %v1057
    %v1174 = vadd.f32 %v1172, %v1173
    %vm1175 = vcmp.eq.s32.totalorder %v596, 4
    %v1176 = vsel %vm1175, 1, 0
    %1177 = vset.pattern.permute.xlu0 0
    %1178 = vperm.xlu0 %1177, %v1176
    %v1179 = vpop.permute.xlu0 %1178
    %vm1180 = vcmp.eq.s32.totalorder %v1179, 1
    %v1181 = vsel %vm1180, %v1174, %v1064
    %v1182 = vld [vmem:[#allocation2 + $0x78] sm:$0xff]
    %v1183 = vld [vmem:[#allocation2 + $0x80] sm:$0xff]
    %v1184 = vld [vmem:[#allocation2 + $0x88] sm:$0xff]
    %1185 = vmatpush.msra.mxu0 %v593
    %1186 = vmatpush.msra.mxu0 %v590
    %1187 = vmatpush.msra.mxu0 %v587
    %1188 = vmatpush.msra.mxu0 %v584
    %1189 = vmatpush.msra.mxu0 %v581
    %1190 = vmatpush.msra.mxu0 %v578
    %1191 = vmatpush.msra.mxu0 %v575
    %1192 = vmatpush.msra.mxu0 %v572
    %1193 = vmatpush.msra.mxu0 %v569
    %1194 = vmatpush.msra.mxu0 %v566
    %1195 = vmatpush.msra.mxu0 %v563
    %1196 = vmatpush.msra.mxu0 %v560
    %1197 = vmatpush.msra.mxu0 %v557
    %1198 = vmatpush.msra.mxu0 %v554
    %1199 = vmatpush.msra.mxu0 %v551
    %1200 = vmatpush.msra.mxu0 %v548
    %1201 = vmatmul.f32.gmra.mxu0 %v1174
    %v1202 = vpop.f32.mrf.mxu0
    %v1203 = vadd.f32 0.0, %v1202
    %1204 = vdwg.mxu0
    %1205 = vmatpush.msra.mxu0 %v594
    %1206 = vmatpush.msra.mxu0 %v591
    %1207 = vmatpush.msra.mxu0 %v588
    %1208 = vmatpush.msra.mxu0 %v585
    %1209 = vmatpush.msra.mxu0 %v582
    %1210 = vmatpush.msra.mxu0 %v579
    %1211 = vmatpush.msra.mxu0 %v576
    %1212 = vmatpush.msra.mxu0 %v573
    %1213 = vmatpush.msra.mxu0 %v570
    %1214 = vmatpush.msra.mxu0 %v567
    %1215 = vmatpush.msra.mxu0 %v564
    %1216 = vmatpush.msra.mxu0 %v561
    %1217 = vmatpush.msra.mxu0 %v558
    %1218 = vmatpush.msra.mxu0 %v555
    %1219 = vmatpush.msra.mxu0 %v552
    %1220 = vmatpush.msra.mxu0 %v549
    %1221 = vmatmul.f32.gmra.mxu0 %v1174
    %v1222 = vpop.f32.mrf.mxu0
    %v1223 = vadd.f32 0.0, %v1222
    %1224 = vdwg.mxu0
    %1225 = vmatpush.msra.mxu0 %v595
    %1226 = vmatpush.msra.mxu0 %v592
    %1227 = vmatpush.msra.mxu0 %v589
    %1228 = vmatpush.msra.mxu0 %v586
    %1229 = vmatpush.msra.mxu0 %v583
    %1230 = vmatpush.msra.mxu0 %v580
    %1231 = vmatpush.msra.mxu0 %v577
    %1232 = vmatpush.msra.mxu0 %v574
    %1233 = vmatpush.msra.mxu0 %v571
    %1234 = vmatpush.msra.mxu0 %v568
    %1235 = vmatpush.msra.mxu0 %v565
    %1236 = vmatpush.msra.mxu0 %v562
    %1237 = vmatpush.msra.mxu0 %v559
    %1238 = vmatpush.msra.mxu0 %v556
    %1239 = vmatpush.msra.mxu0 %v553
    %1240 = vmatpush.msra.mxu0 %v550
    %1241 = vmatmul.f32.gmra.mxu0 %v1174
    %v1242 = vpop.f32.mrf.mxu0
    %v1243 = vadd.f32 0.0, %v1242
    %1244 = vdwg.mxu0
    %v1245 = vadd.f32 %v1182, %v1203
    %v1246 = vsub.f32 0.0, %v1245
    %v1247 = vmul.f32 %v1246, 1.442695
    %v1248 = vpow.pop %v1247
    %v1249 = vadd.f32 %v1248, 1.0
    %v1250 = vrcp.pop %v1249
    %v1251 = vmul.f32 %v1249, %v1250
    %v1252 = vsub.f32 1.0, %v1251
    %v1253 = vmul.f32 %v1250, %v1252
    %v1254 = vadd.f32 %v1250, %v1253
    %vm1255 = vweird.f32 %v1249
    %vm1256 = vweird.f32 %v1250
    %vm1257 = vmor %vm1255, %vm1256
    %v1258 = vsel %vm1257, %v1250, %v1254
    %v1259 = vand.u32 2147483647, %v1249
    %vm1260 = vcmp.eq.f32.partialorder %v1259, 8.507059e+37
    %v1261 = vand.u32 %v1249, 2147483648
    %v1262 = vor.u32 1.1754944e-38, %v1261
    %v1263 = vsel %vm1260, %v1262, %v1258
    %v1264 = vmul.f32 1.0, %v1263
    %v1265 = vadd.f32 %v1183, %v1223
    %v1266 = vsub.f32 0.0, %v1265
    %v1267 = vmul.f32 %v1266, 1.442695
    %v1268 = vpow.pop %v1267
    %v1269 = vadd.f32 %v1268, 1.0
    %v1270 = vrcp.pop %v1269
    %v1271 = vmul.f32 %v1269, %v1270
    %v1272 = vsub.f32 1.0, %v1271
    %v1273 = vmul.f32 %v1270, %v1272
    %v1274 = vadd.f32 %v1270, %v1273
    %vm1275 = vweird.f32 %v1269
    %vm1276 = vweird.f32 %v1270
    %vm1277 = vmor %vm1275, %vm1276
    %v1278 = vsel %vm1277, %v1270, %v1274
    %v1279 = vand.u32 2147483647, %v1269
    %vm1280 = vcmp.eq.f32.partialorder %v1279, 8.507059e+37
    %v1281 = vand.u32 %v1269, 2147483648
    %v1282 = vor.u32 1.1754944e-38, %v1281
    %v1283 = vsel %vm1280, %v1282, %v1278
    %v1284 = vmul.f32 1.0, %v1283
    %v1285 = vmul.f32 %v1264, %v1243
    %v1286 = vadd.f32 %v1184, %v1285
    %v1287 = vtanh.pop %v1286
    %v1288 = vsub.f32 1.0, %v1284
    %v1289 = vmul.f32 %v1288, %v1287
    %v1290 = vmul.f32 %v1284, %v1174
    %v1291 = vadd.f32 %v1289, %v1290
    %vm1292 = vcmp.eq.s32.totalorder %v596, 5
    %v1293 = vsel %vm1292, 1, 0
    %1294 = vset.pattern.permute.xlu0 0
    %1295 = vperm.xlu0 %1294, %v1293
    %v1296 = vpop.permute.xlu0 %1295
    %vm1297 = vcmp.eq.s32.totalorder %v1296, 1
    %v1298 = vsel %vm1297, %v1291, %v1181
    %v1299 = vld [vmem:[#allocation2 + $0x90] sm:$0xff]
    %v1300 = vld [vmem:[#allocation2 + $0x98] sm:$0xff]
    %v1301 = vld [vmem:[#allocation2 + $0xa0] sm:$0xff]
    %1302 = vmatpush.msra.mxu0 %v593
    %1303 = vmatpush.msra.mxu0 %v590
    %1304 = vmatpush.msra.mxu0 %v587
    %1305 = vmatpush.msra.mxu0 %v584
    %1306 = vmatpush.msra.mxu0 %v581
    %1307 = vmatpush.msra.mxu0 %v578
    %1308 = vmatpush.msra.mxu0 %v575
    %1309 = vmatpush.msra.mxu0 %v572
    %1310 = vmatpush.msra.mxu0 %v569
    %1311 = vmatpush.msra.mxu0 %v566
    %1312 = vmatpush.msra.mxu0 %v563
    %1313 = vmatpush.msra.mxu0 %v560
    %1314 = vmatpush.msra.mxu0 %v557
    %1315 = vmatpush.msra.mxu0 %v554
    %1316 = vmatpush.msra.mxu0 %v551
    %1317 = vmatpush.msra.mxu0 %v548
    %1318 = vmatmul.f32.gmra.mxu0 %v1291
    %v1319 = vpop.f32.mrf.mxu0
    %v1320 = vadd.f32 0.0, %v1319
    %1321 = vdwg.mxu0
    %1322 = vmatpush.msra.mxu0 %v594
    %1323 = vmatpush.msra.mxu0 %v591
    %1324 = vmatpush.msra.mxu0 %v588
    %1325 = vmatpush.msra.mxu0 %v585
    %1326 = vmatpush.msra.mxu0 %v582
    %1327 = vmatpush.msra.mxu0 %v579
    %1328 = vmatpush.msra.mxu0 %v576
    %1329 = vmatpush.msra.mxu0 %v573
    %1330 = vmatpush.msra.mxu0 %v570
    %1331 = vmatpush.msra.mxu0 %v567
    %1332 = vmatpush.msra.mxu0 %v564
    %1333 = vmatpush.msra.mxu0 %v561
    %1334 = vmatpush.msra.mxu0 %v558
    %1335 = vmatpush.msra.mxu0 %v555
    %1336 = vmatpush.msra.mxu0 %v552
    %1337 = vmatpush.msra.mxu0 %v549
    %1338 = vmatmul.f32.gmra.mxu0 %v1291
    %v1339 = vpop.f32.mrf.mxu0
    %v1340 = vadd.f32 0.0, %v1339
    %1341 = vdwg.mxu0
    %1342 = vmatpush.msra.mxu0 %v595
    %1343 = vmatpush.msra.mxu0 %v592
    %1344 = vmatpush.msra.mxu0 %v589
    %1345 = vmatpush.msra.mxu0 %v586
    %1346 = vmatpush.msra.mxu0 %v583
    %1347 = vmatpush.msra.mxu0 %v580
    %1348 = vmatpush.msra.mxu0 %v577
    %1349 = vmatpush.msra.mxu0 %v574
    %1350 = vmatpush.msra.mxu0 %v571
    %1351 = vmatpush.msra.mxu0 %v568
    %1352 = vmatpush.msra.mxu0 %v565
    %1353 = vmatpush.msra.mxu0 %v562
    %1354 = vmatpush.msra.mxu0 %v559
    %1355 = vmatpush.msra.mxu0 %v556
    %1356 = vmatpush.msra.mxu0 %v553
    %1357 = vmatpush.msra.mxu0 %v550
    %1358 = vmatmul.f32.gmra.mxu0 %v1291
    %v1359 = vpop.f32.mrf.mxu0
    %v1360 = vadd.f32 0.0, %v1359
    %1361 = vdwg.mxu0
    %v1362 = vadd.f32 %v1299, %v1320
    %v1363 = vsub.f32 0.0, %v1362
    %v1364 = vmul.f32 %v1363, 1.442695
    %v1365 = vpow.pop %v1364
    %v1366 = vadd.f32 %v1365, 1.0
    %v1367 = vrcp.pop %v1366
    %v1368 = vmul.f32 %v1366, %v1367
    %v1369 = vsub.f32 1.0, %v1368
    %v1370 = vmul.f32 %v1367, %v1369
    %v1371 = vadd.f32 %v1367, %v1370
    %vm1372 = vweird.f32 %v1366
    %vm1373 = vweird.f32 %v1367
    %vm1374 = vmor %vm1372, %vm1373
    %v1375 = vsel %vm1374, %v1367, %v1371
    %v1376 = vand.u32 2147483647, %v1366
    %vm1377 = vcmp.eq.f32.partialorder %v1376, 8.507059e+37
    %v1378 = vand.u32 %v1366, 2147483648
    %v1379 = vor.u32 1.1754944e-38, %v1378
    %v1380 = vsel %vm1377, %v1379, %v1375
    %v1381 = vmul.f32 1.0, %v1380
    %v1382 = vadd.f32 %v1300, %v1340
    %v1383 = vsub.f32 0.0, %v1382
    %v1384 = vmul.f32 %v1383, 1.442695
    %v1385 = vpow.pop %v1384
    %v1386 = vadd.f32 %v1385, 1.0
    %v1387 = vrcp.pop %v1386
    %v1388 = vmul.f32 %v1386, %v1387
    %v1389 = vsub.f32 1.0, %v1388
    %v1390 = vmul.f32 %v1387, %v1389
    %v1391 = vadd.f32 %v1387, %v1390
    %vm1392 = vweird.f32 %v1386
    %vm1393 = vweird.f32 %v1387
    %vm1394 = vmor %vm1392, %vm1393
    %v1395 = vsel %vm1394, %v1387, %v1391
    %v1396 = vand.u32 2147483647, %v1386
    %vm1397 = vcmp.eq.f32.partialorder %v1396, 8.507059e+37
    %v1398 = vand.u32 %v1386, 2147483648
    %v1399 = vor.u32 1.1754944e-38, %v1398
    %v1400 = vsel %vm1397, %v1399, %v1395
    %v1401 = vmul.f32 1.0, %v1400
    %v1402 = vmul.f32 %v1381, %v1360
    %v1403 = vadd.f32 %v1301, %v1402
    %v1404 = vtanh.pop %v1403
    %v1405 = vsub.f32 1.0, %v1401
    %v1406 = vmul.f32 %v1405, %v1404
    %v1407 = vmul.f32 %v1401, %v1291
    %v1408 = vadd.f32 %v1406, %v1407
    %vm1409 = vcmp.eq.s32.totalorder %v596, 6
    %v1410 = vsel %vm1409, 1, 0
    %1411 = vset.pattern.permute.xlu0 0
    %1412 = vperm.xlu0 %1411, %v1410
    %v1413 = vpop.permute.xlu0 %1412
    %vm1414 = vcmp.eq.s32.totalorder %v1413, 1
    %v1415 = vsel %vm1414, %v1408, %v1298
    %v1416 = vld [vmem:[#allocation2 + $0xa8] sm:$0xff]
    %v1417 = vld [vmem:[#allocation2 + $0xb0] sm:$0xff]
    %v1418 = vld [vmem:[#allocation2 + $0xb8] sm:$0xff]
    %1419 = vmatpush.msra.mxu0 %v593
    %1420 = vmatpush.msra.mxu0 %v590
    %1421 = vmatpush.msra.mxu0 %v587
    %1422 = vmatpush.msra.mxu0 %v584
    %1423 = vmatpush.msra.mxu0 %v581
    %1424 = vmatpush.msra.mxu0 %v578
    %1425 = vmatpush.msra.mxu0 %v575
    %1426 = vmatpush.msra.mxu0 %v572
    %1427 = vmatpush.msra.mxu0 %v569
    %1428 = vmatpush.msra.mxu0 %v566
    %1429 = vmatpush.msra.mxu0 %v563
    %1430 = vmatpush.msra.mxu0 %v560
    %1431 = vmatpush.msra.mxu0 %v557
    %1432 = vmatpush.msra.mxu0 %v554
    %1433 = vmatpush.msra.mxu0 %v551
    %1434 = vmatpush.msra.mxu0 %v548
    %1435 = vmatmul.f32.gmra.mxu0 %v1408
    %v1436 = vpop.f32.mrf.mxu0
    %v1437 = vadd.f32 0.0, %v1436
    %1438 = vdwg.mxu0
    %1439 = vmatpush.msra.mxu0 %v594
    %1440 = vmatpush.msra.mxu0 %v591
    %1441 = vmatpush.msra.mxu0 %v588
    %1442 = vmatpush.msra.mxu0 %v585
    %1443 = vmatpush.msra.mxu0 %v582
    %1444 = vmatpush.msra.mxu0 %v579
    %1445 = vmatpush.msra.mxu0 %v576
    %1446 = vmatpush.msra.mxu0 %v573
    %1447 = vmatpush.msra.mxu0 %v570
    %1448 = vmatpush.msra.mxu0 %v567
    %1449 = vmatpush.msra.mxu0 %v564
    %1450 = vmatpush.msra.mxu0 %v561
    %1451 = vmatpush.msra.mxu0 %v558
    %1452 = vmatpush.msra.mxu0 %v555
    %1453 = vmatpush.msra.mxu0 %v552
    %1454 = vmatpush.msra.mxu0 %v549
    %1455 = vmatmul.f32.gmra.mxu0 %v1408
    %v1456 = vpop.f32.mrf.mxu0
    %v1457 = vadd.f32 0.0, %v1456
    %1458 = vdwg.mxu0
    %1459 = vmatpush.msra.mxu0 %v595
    %1460 = vmatpush.msra.mxu0 %v592
    %1461 = vmatpush.msra.mxu0 %v589
    %1462 = vmatpush.msra.mxu0 %v586
    %1463 = vmatpush.msra.mxu0 %v583
    %1464 = vmatpush.msra.mxu0 %v580
    %1465 = vmatpush.msra.mxu0 %v577
    %1466 = vmatpush.msra.mxu0 %v574
    %1467 = vmatpush.msra.mxu0 %v571
    %1468 = vmatpush.msra.mxu0 %v568
    %1469 = vmatpush.msra.mxu0 %v565
    %1470 = vmatpush.msra.mxu0 %v562
    %1471 = vmatpush.msra.mxu0 %v559
    %1472 = vmatpush.msra.mxu0 %v556
    %1473 = vmatpush.msra.mxu0 %v553
    %1474 = vmatpush.msra.mxu0 %v550
    %1475 = vmatmul.f32.gmra.mxu0 %v1408
    %v1476 = vpop.f32.mrf.mxu0
    %v1477 = vadd.f32 0.0, %v1476
    %1478 = vdwg.mxu0
    %v1479 = vadd.f32 %v1416, %v1437
    %v1480 = vsub.f32 0.0, %v1479
    %v1481 = vmul.f32 %v1480, 1.442695
    %v1482 = vpow.pop %v1481
    %v1483 = vadd.f32 %v1482, 1.0
    %v1484 = vrcp.pop %v1483
    %v1485 = vmul.f32 %v1483, %v1484
    %v1486 = vsub.f32 1.0, %v1485
    %v1487 = vmul.f32 %v1484, %v1486
    %v1488 = vadd.f32 %v1484, %v1487
    %vm1489 = vweird.f32 %v1483
    %vm1490 = vweird.f32 %v1484
    %vm1491 = vmor %vm1489, %vm1490
    %v1492 = vsel %vm1491, %v1484, %v1488
    %v1493 = vand.u32 2147483647, %v1483
    %vm1494 = vcmp.eq.f32.partialorder %v1493, 8.507059e+37
    %v1495 = vand.u32 %v1483, 2147483648
    %v1496 = vor.u32 1.1754944e-38, %v1495
    %v1497 = vsel %vm1494, %v1496, %v1492
    %v1498 = vmul.f32 1.0, %v1497
    %v1499 = vadd.f32 %v1417, %v1457
    %v1500 = vsub.f32 0.0, %v1499
    %v1501 = vmul.f32 %v1500, 1.442695
    %v1502 = vpow.pop %v1501
    %v1503 = vadd.f32 %v1502, 1.0
    %v1504 = vrcp.pop %v1503
    %v1505 = vmul.f32 %v1503, %v1504
    %v1506 = vsub.f32 1.0, %v1505
    %v1507 = vmul.f32 %v1504, %v1506
    %v1508 = vadd.f32 %v1504, %v1507
    %vm1509 = vweird.f32 %v1503
    %vm1510 = vweird.f32 %v1504
    %vm1511 = vmor %vm1509, %vm1510
    %v1512 = vsel %vm1511, %v1504, %v1508
    %v1513 = vand.u32 2147483647, %v1503
    %vm1514 = vcmp.eq.f32.partialorder %v1513, 8.507059e+37
    %v1515 = vand.u32 %v1503, 2147483648
    %v1516 = vor.u32 1.1754944e-38, %v1515
    %v1517 = vsel %vm1514, %v1516, %v1512
    %v1518 = vmul.f32 1.0, %v1517
    %v1519 = vmul.f32 %v1498, %v1477
    %v1520 = vadd.f32 %v1418, %v1519
    %v1521 = vtanh.pop %v1520
    %v1522 = vsub.f32 1.0, %v1518
    %v1523 = vmul.f32 %v1522, %v1521
    %v1524 = vmul.f32 %v1518, %v1408
    %v1525 = vadd.f32 %v1523, %v1524
    %vm1526 = vcmp.eq.s32.totalorder %v596, 7
    %v1527 = vsel %vm1526, 1, 0
    %1528 = vset.pattern.permute.xlu0 0
    %1529 = vperm.xlu0 %1528, %v1527
    %v1530 = vpop.permute.xlu0 %1529
    %vm1531 = vcmp.eq.s32.totalorder %v1530, 1
    %v1532 = vsel %vm1531, %v1525, %v1415
    %v1533 = vld [vmem:[%s4] sm:$0xff]
    %v1534 = vld [vmem:[%s4 + $0x8] sm:$0xff]
    %v1535 = vld [vmem:[%s4 + $0x10] sm:$0xff]
    %v1536 = vld [vmem:[%s4 + $0x18] sm:$0xff]
    %v1537 = vld [vmem:[%s4 + $0x20] sm:$0xff]
    %v1538 = vld [vmem:[%s4 + $0x28] sm:$0xff]
    %v1539 = vld [vmem:[%s4 + $0x30] sm:$0xff]
    %v1540 = vld [vmem:[%s4 + $0x38] sm:$0xff]
    %v1541 = vld [vmem:[%s4 + $0x40] sm:$0xff]
    %v1542 = vld [vmem:[%s4 + $0x48] sm:$0xff]
    %v1543 = vld [vmem:[%s4 + $0x50] sm:$0xff]
    %v1544 = vld [vmem:[%s4 + $0x58] sm:$0xff]
    %v1545 = vld [vmem:[%s4 + $0x60] sm:$0xff]
    %v1546 = vld [vmem:[%s4 + $0x68] sm:$0xff]
    %v1547 = vld [vmem:[%s4 + $0x70] sm:$0xff]
    %v1548 = vld [vmem:[%s4 + $0x78] sm:$0xff]
    %v1549 = vld [vmem:[%s5] sm:$0x1]
    %v1551 = vperm.slane %v1549, 0
    %1553 = vmatpush.msra.mxu0 %v1548
    %1554 = vmatpush.msra.mxu0 %v1547
    %1555 = vmatpush.msra.mxu0 %v1546
    %1556 = vmatpush.msra.mxu0 %v1545
    %1557 = vmatpush.msra.mxu0 %v1544
    %1558 = vmatpush.msra.mxu0 %v1543
    %1559 = vmatpush.msra.mxu0 %v1542
    %1560 = vmatpush.msra.mxu0 %v1541
    %1561 = vmatpush.msra.mxu0 %v1540
    %1562 = vmatpush.msra.mxu0 %v1539
    %1563 = vmatpush.msra.mxu0 %v1538
    %1564 = vmatpush.msra.mxu0 %v1537
    %1565 = vmatpush.msra.mxu0 %v1536
    %1566 = vmatpush.msra.mxu0 %v1535
    %1567 = vmatpush.msra.mxu0 %v1534
    %1568 = vmatpush.msra.mxu0 %v1533
    %1569 = vmatmul.f32.gmra.mxu0 %v1532
    %v1570 = vpop.f32.mrf.mxu0
    %v1571 = vadd.f32 %v1551, %v1570
    %1572 = vdwg.mxu0
    %v1574 = vsel %vm376, %v1571, 0
    %v1577 = vsel %vm376, %v359, 0
    %1579 = vmatpush.xpose.msra.mxu0 0.0
    %1580 = vmatpush.xpose.msra.mxu0 0.0
    %1581 = vmatpush.xpose.msra.mxu0 0.0
    %1582 = vmatpush.xpose.msra.mxu0 0.0
    %1583 = vmatpush.xpose.msra.mxu0 0.0
    %1584 = vmatpush.xpose.msra.mxu0 0.0
    %1585 = vmatpush.xpose.msra.mxu0 0.0
    %1586 = vmatpush.xpose.msra.mxu0 0.0
    %1587 = vmatpush.xpose.msra.mxu0 0.0
    %1588 = vmatpush.xpose.msra.mxu0 0.0
    %1589 = vmatpush.xpose.msra.mxu0 0.0
    %1590 = vmatpush.xpose.msra.mxu0 0.0
    %1591 = vmatpush.xpose.msra.mxu0 0.0
    %1592 = vmatpush.xpose.msra.mxu0 0.0
    %1593 = vmatpush.xpose.msra.mxu0 0.0
    %1594 = vmatpush.xpose.msra.mxu0 %v1577
    %1595 = vmatmul.f32.gmra.mxu0 %v1574
    %v1596 = vpop.f32.mrf.mxu0
    %v1597 = vadd.f32 0.0, %v1596
    %1598 = vdwg.mxu0
    %vm1599 = vcmask 24576
    %1600 = vst.msk [vmem:[#allocation6] sm:$0x1] %vm1599, %v1597
    %v1601 = vsel %vm1599, %v1597, -inf
    %1602 = vmax.xlane.f32.xlu0 %v1601
    %v1603 = vpop.xlane.xlu0 %1602
    %v1604 = vsub.f32 %v1597, %v1603
    %v1605 = vmul.f32 %v1604, 1.442695
    %v1606 = vpow.pop %v1605
    %v1607 = vsel %vm1599, %v1606, 0.0
    %1608 = vadd.xlane.f32.xlu0 %v1607
    %v1609 = vpop.xlane.xlu0 %1608
    %v1610 = vlog2.pop %v1609
    %v1611 = vmul.f32 %v1610, 0.6931472
    %v1612 = vadd.f32 %v1603, %v1611
    %v1613 = vld [vmem:[%s7] sm:$0x1]
    %1614 = vset.pattern.permute.xlu0 0
    %1615 = vperm.xlu0 %1614, %v1613
    %v1616 = vpop.permute.xlu0 %1615
    %vm1617 = vcmp.eq.s32.totalorder %v50, %v1616
    %v1618 = vsel %vm1617, %v1597, 0.0
    %v1619 = vsel %vm1599, %v1618, 0.0
    %1620 = vadd.xlane.f32.xlu0 %v1619
    %v1621 = vpop.xlane.xlu0 %1620
    %v1622 = vsub.f32 %v1612, %v1621
    %v1623 = vadd.f32 %v1622, 0.0
    %v1624 = vrot.slane %v1571, 1
    %v1625 = vsel %vm376, %v1624, 0
    %v1628 = vsel %vm376, %v362, 0
    %1630 = vmatpush.xpose.msra.mxu0 0.0
    %1631 = vmatpush.xpose.msra.mxu0 0.0
    %1632 = vmatpush.xpose.msra.mxu0 0.0
    %1633 = vmatpush.xpose.msra.mxu0 0.0
    %1634 = vmatpush.xpose.msra.mxu0 0.0
    %1635 = vmatpush.xpose.msra.mxu0 0.0
    %1636 = vmatpush.xpose.msra.mxu0 0.0
    %1637 = vmatpush.xpose.msra.mxu0 0.0
    %1638 = vmatpush.xpose.msra.mxu0 0.0
    %1639 = vmatpush.xpose.msra.mxu0 0.0
    %1640 = vmatpush.xpose.msra.mxu0 0.0
    %1641 = vmatpush.xpose.msra.mxu0 0.0
    %1642 = vmatpush.xpose.msra.mxu0 0.0
    %1643 = vmatpush.xpose.msra.mxu0 0.0
    %1644 = vmatpush.xpose.msra.mxu0 0.0
    %1645 = vmatpush.xpose.msra.mxu0 %v1628
    %1646 = vmatmul.f32.gmra.mxu0 %v1625
    %v1647 = vpop.f32.mrf.mxu0
    %v1648 = vadd.f32 0.0, %v1647
    %1649 = vdwg.mxu0
    %1650 = vst.msk [vmem:[#allocation6 + $0x1] sm:$0x1] %vm1599, %v1648
    %v1651 = vsel %vm1599, %v1648, -inf
    %1652 = vmax.xlane.f32.xlu0 %v1651
    %v1653 = vpop.xlane.xlu0 %1652
    %v1654 = vsub.f32 %v1648, %v1653
    %v1655 = vmul.f32 %v1654, 1.442695
    %v1656 = vpow.pop %v1655
    %v1657 = vsel %vm1599, %v1656, 0.0
    %1658 = vadd.xlane.f32.xlu0 %v1657
    %v1659 = vpop.xlane.xlu0 %1658
    %v1660 = vlog2.pop %v1659
    %v1661 = vmul.f32 %v1660, 0.6931472
    %v1662 = vadd.f32 %v1653, %v1661
    %v1663 = vld [vmem:[%s7 + $0x1] sm:$0x1]
    %1664 = vset.pattern.permute.xlu0 0
    %1665 = vperm.xlu0 %1664, %v1663
    %v1666 = vpop.permute.xlu0 %1665
    %vm1667 = vcmp.eq.s32.totalorder %v50, %v1666
    %v1668 = vsel %vm1667, %v1648, 0.0
    %v1669 = vsel %vm1599, %v1668, 0.0
    %1670 = vadd.xlane.f32.xlu0 %v1669
    %v1671 = vpop.xlane.xlu0 %1670
    %v1672 = vsub.f32 %v1662, %v1671
    %v1673 = vadd.f32 %v1623, %v1672
    %v1674 = vmul.f32 %v1673, 0.5
    %vm1675 = vcmask 0
    %1676 = vst.msk [vmem:[#allocation7] sm:$0x1] %vm1675, %v1674
    // Predicated region
    $region38: #{_gru4rec_forward.1} parent=1 // pred_check
      _
    $region39: #{_gru4rec_forward.1} parent=1 // pred_check_branch
      %1678 = sbr.rel (0) target = $region41
    $region40: #{_gru4rec_forward.1} parent=1 // pred_region
      %1680 = vsyncadd [#allocation5], 0
      %s1682 = sshll.u32 [#allocation6], 4
      %s1683 = int_to_ptr.vmem [resolvable:$true] %s1682
      %s1684 = sshll.u32 %s8, 4
      %s1685 = int_to_ptr.hbm [resolvable:$true] %s1684
      %1687 = dma.vmem_to_hbm [thread:$0]  %s1683, 32, %s1685, [#allocation5]
    $region41: #{_gru4rec_forward.1} parent=1 // pred_fallthru
      _
    // Predicated region
    $region42: #{_gru4rec_forward.1} parent=1 // pred_check
      _
    $region43: #{_gru4rec_forward.1} parent=1 // pred_check_branch
      %1689 = sbr.rel (0) target = $region45
    $region44: #{_gru4rec_forward.1} parent=1 // pred_region
      %1691 = vsyncadd [#allocation8], 0
      %s1693 = sshll.u32 [#allocation7], 4
      %s1694 = int_to_ptr.vmem [resolvable:$true] %s1693
      %s1695 = sshll.u32 %s9, 4
      %s1696 = int_to_ptr.hbm [resolvable:$true] %s1695
      %1698 = dma.vmem_to_hbm [thread:$0]  %s1694, 16, %s1696, [#allocation8]
    $region45: #{_gru4rec_forward.1} parent=1 // pred_fallthru
      _
    // Predicated region
    $region46: #{_gru4rec_forward.1} parent=1 // pred_check
      _
    $region47: #{_gru4rec_forward.1} parent=1 // pred_check_branch
      %1700 = sbr.rel (0) target = $region49
    $region48: #{_gru4rec_forward.1} parent=1 // pred_region
      %1702 = dma.done [#allocation5], 32
    $region49: #{_gru4rec_forward.1} parent=1 // pred_fallthru
      _
    // Predicated region
    $region50: #{_gru4rec_forward.1} parent=1 // pred_check
      _
    $region51: #{_gru4rec_forward.1} parent=1 // pred_check_branch
      %1704 = sbr.rel (0) target = $region53
    $region52: #{_gru4rec_forward.1} parent=1 // pred_region
      %1706 = dma.done [#allocation8], 16
    $region53: #{_gru4rec_forward.1} parent=1 // pred_fallthru
      _
    %1707 = vsyncpa [#allocation4], 1
    %1708 = vsyncpa [#allocation5], 1
    %1709 = vsyncpa [#allocation8], 1

</llo_original>
